<compile_context>
chip_gen: v7x
topology: tpu7x:2x2x1
jax: 0.10.0
libtpu: 0.0.40
codegen_flags: <defaults>
</compile_context>

<pallas_src>
import jax
import jax.numpy as jnp
from jax.experimental import pallas as pl
from jax.experimental.pallas import tpu as pltpu


# Padded layer widths (128-lane / MXU friendly).  True widths are 400/200/100/1;
# the extra rows/columns are zero, so results are unchanged.
H1, H2, H3, H4 = 512, 256, 128, 128


def _round_up(x, m):
    return ((x + m - 1) // m) * m


def classifier_kernel(x_ref,
                      w1_ref, b1_ref,
                      w2_ref, b2_ref,
                      w3_ref, b3_ref,
                      w4_ref, b4_ref,
                      out_ref):
    """One batch tile of the MLP: 4x (bf16 matmul, f32 accumulate) + ReLU/sigmoid."""
    x = x_ref[...]                                                       # (TB, Din) bf16

    h = jnp.dot(x, w1_ref[...], preferred_element_type=jnp.float32) + b1_ref[...]
    h = jnp.maximum(h, 0.0)
    h = jnp.dot(h.astype(jnp.bfloat16), w2_ref[...],
                preferred_element_type=jnp.float32) + b2_ref[...]
    h = jnp.maximum(h, 0.0)
    h = jnp.dot(h.astype(jnp.bfloat16), w3_ref[...],
                preferred_element_type=jnp.float32) + b3_ref[...]
    h = jnp.maximum(h, 0.0)

    logit = jnp.dot(h.astype(jnp.bfloat16), w4_ref[...],
                    preferred_element_type=jnp.float32) + b4_ref[...]
    # Lane-dense (TB, 128) store; only column 0 is meaningful (the padded final
    # layer has zero weights/bias elsewhere -> sigmoid(0)=0.5, sliced off later).
    # exp and approx reciprocal both run on the EUP (free slot vs VPU).
    out_ref[...] = pl.reciprocal(1.0 + jnp.exp(-logit), approx=True)


def classifier_forward(x, params, *, tile_b=512):
    """x: (B, C, H, W) or (B, input_size) float32.  Returns (B,) sigmoid outputs."""
    if x.ndim == 4:
        x = x.reshape(x.shape[0], -1)                  # torch .view(B, -1)
    B, d_in = x.shape

    (w1, b1), (w2, b2), (w3, b3), (w4, b4) = params
    d_in_pad = w1.shape[0]

    # Batch tile: tiny batches get one small tile (no pipelining overhead),
    # large batches get 512-row tiles pipelined over a parallel grid.
    tb = min(tile_b, _round_up(max(B, 1), 8))
    b_pad = _round_up(B, tb)

    # Zero-pad batch rows and input features (padded rows/cols are discarded),
    # and cast to bf16 for half-size x DMA / native MXU input.
    x_p = jnp.pad(x.astype(jnp.bfloat16),
                  ((0, b_pad - B), (0, d_in_pad - d_in)))

    grid = (b_pad // tb,)

    batch_map = lambda i: (i, 0)      # x / output tiles march down the batch
    resident_map = lambda i: (0, 0)   # weights & biases stay VMEM-resident

    flops = 2 * b_pad * (d_in_pad * H1 + H1 * H2 + H2 * H3 + H3 * H4)
    bytes_accessed = (
        x_p.size * 2 + b_pad * H4 * 4
        + sum(int(w.size) * 2 + int(b.size) * 4 for (w, b) in params)
    )

    out = pl.pallas_call(
        classifier_kernel,
        out_shape=jax.ShapeDtypeStruct((b_pad, H4), jnp.float32),
        grid_spec=pltpu.PrefetchScalarGridSpec(
            num_scalar_prefetch=0,
            grid=grid,
            in_specs=[
                pl.BlockSpec((tb, d_in_pad), batch_map),   # x tile (double-buffered)
                pl.BlockSpec(w1.shape, resident_map),
                pl.BlockSpec(b1.shape, resident_map),
                pl.BlockSpec(w2.shape, resident_map),
                pl.BlockSpec(b2.shape, resident_map),
                pl.BlockSpec(w3.shape, resident_map),
                pl.BlockSpec(b3.shape, resident_map),
                pl.BlockSpec(w4.shape, resident_map),
                pl.BlockSpec(b4.shape, resident_map),
            ],
            out_specs=pl.BlockSpec((tb, H4), batch_map),
        ),
        compiler_params=pltpu.CompilerParams(
            dimension_semantics=("parallel",),             # megacore on v7x
            vmem_limit_bytes=64 * 1024 * 1024,
        ),
        cost_estimate=pl.CostEstimate(
            flops=flops,
            transcendentals=b_pad * H4,
            bytes_accessed=bytes_accessed,
        ),
    )(x_p, w1, b1, w2, b2, w3, b3, w4, b4)

    return out[:B, 0]                                      # .view(-1), drop padding


def init_linear_params(key, fan_in, fan_out, pad_in, pad_out):
    """torch nn.Linear-style init (uniform +-1/sqrt(fan_in)).

    Returns (padded bf16 weight (pad_in, pad_out), padded f32 bias (1, pad_out))
    plus the unpadded f32 pair for the reference check.  Weight layout is
    (in_features, out_features) so the kernel does plain `x @ W + b`.
    """
    kw, kb = jax.random.split(key)
    bound = 1.0 / jnp.sqrt(jnp.float32(fan_in))
    w = jax.random.uniform(kw, (fan_in, fan_out), jnp.float32, -bound, bound)
    b = jax.random.uniform(kb, (1, fan_out), jnp.float32, -bound, bound)

    w_p = jnp.zeros((pad_in, pad_out), jnp.bfloat16)
    w_p = w_p.at[:fan_in, :fan_out].set(w.astype(jnp.bfloat16))
    b_p = jnp.zeros((1, pad_out), jnp.float32)
    b_p = b_p.at[:, :fan_out].set(b)
    return (w_p, b_p), (w, b)


if __name__ == "__main__":
    key = jax.random.PRNGKey(0)

    # Small NCHW input: batch=2, channels=4, spatial=16x16 -> input_size = 1024.
    B, C, Hs, Ws = 2, 4, 16, 16
    input_size = C * Hs * Ws
    d_in_pad = _round_up(input_size, 128)

    k_x, k1, k2, k3, k4 = jax.random.split(key, 5)
    x = jax.random.normal(k_x, (B, C, Hs, Ws), jnp.float32)

    (p1, r1) = init_linear_params(k1, input_size, 400, d_in_pad, H1)
    (p2, r2) = init_linear_params(k2, 400, 200, H1, H2)
    (p3, r3) = init_linear_params(k3, 200, 100, H2, H3)
    (p4, r4) = init_linear_params(k4, 100, 1, H3, H4)
    params = (p1, p2, p3, p4)

    y = classifier_forward(x, params)
    jax.block_until_ready(y)
    assert y.shape == (B,)

    # Reference 1: identical bf16-weight / f32-accumulate math in plain JAX.
    xf = x.reshape(B, -1)
    xf_p = jnp.zeros((B, d_in_pad), jnp.bfloat16).at[:, :input_size].set(
        xf.astype(jnp.bfloat16))
    h = xf_p
    for (w, b) in (p1, p2, p3):
        h = jnp.maximum(jnp.dot(h, w, preferred_element_type=jnp.float32) + b, 0.0)
        h = h.astype(jnp.bfloat16)
    ref_bf16 = (1.0 / (1.0 + jnp.exp(
        -(jnp.dot(h, p4[0], preferred_element_type=jnp.float32) + p4[1]))))[:, 0]

    # Reference 2: the original full-f32 PyTorch math (loose check: bf16 quantization).
    hf = xf
    for (w, b) in (r1, r2, r3):
        hf = jnp.maximum(hf @ w + b, 0.0)
    ref_f32 = jax.nn.sigmoid(hf @ r4[0] + r4[1]).reshape(-1)

    assert jnp.allclose(y, ref_bf16, atol=5e-3, rtol=5e-3), (y, ref_bf16)
    assert jnp.allclose(y, ref_f32, atol=3e-2, rtol=3e-2), (y, ref_f32)
    print("KERNEL_OK")
</pallas_src>

<mosaic_0001>
module attributes {stable_mosaic.version = 11 : i64} {
  func.func @classifier_kernel(%arg0: i32, %arg1: memref<8x1024xbf16, #tpu.memory_space<vmem>>, %arg2: memref<1024x512xbf16, #tpu.memory_space<vmem>>, %arg3: memref<1x512xf32, #tpu.memory_space<vmem>>, %arg4: memref<512x256xbf16, #tpu.memory_space<vmem>>, %arg5: memref<1x256xf32, #tpu.memory_space<vmem>>, %arg6: memref<256x128xbf16, #tpu.memory_space<vmem>>, %arg7: memref<1x128xf32, #tpu.memory_space<vmem>>, %arg8: memref<128x128xbf16, #tpu.memory_space<vmem>>, %arg9: memref<1x128xf32, #tpu.memory_space<vmem>>, %arg10: memref<8x128xf32, #tpu.memory_space<vmem>>) attributes {dimension_semantics = [#tpu.dimension_semantics<parallel>], iteration_bounds = array<i64: 1>, scalar_prefetch = 0 : i64, scratch_operands = 0 : i64, tpu.core_type = #tpu.core_type<tc>, window_params = [{transform_indices = @transform_0, window_bounds = array<i64: 8, 1024>}, {pipeline_mode = #tpu.pipeline_mode<synchronous>, transform_indices = @transform_1, window_bounds = array<i64: 1024, 512>}, {pipeline_mode = #tpu.pipeline_mode<synchronous>, transform_indices = @transform_2, window_bounds = array<i64: 1, 512>}, {pipeline_mode = #tpu.pipeline_mode<synchronous>, transform_indices = @transform_3, window_bounds = array<i64: 512, 256>}, {pipeline_mode = #tpu.pipeline_mode<synchronous>, transform_indices = @transform_4, window_bounds = array<i64: 1, 256>}, {pipeline_mode = #tpu.pipeline_mode<synchronous>, transform_indices = @transform_5, window_bounds = array<i64: 256, 128>}, {pipeline_mode = #tpu.pipeline_mode<synchronous>, transform_indices = @transform_6, window_bounds = array<i64: 1, 128>}, {pipeline_mode = #tpu.pipeline_mode<synchronous>, transform_indices = @transform_7, window_bounds = array<i64: 128, 128>}, {pipeline_mode = #tpu.pipeline_mode<synchronous>, transform_indices = @transform_8, window_bounds = array<i64: 1, 128>}, {transform_indices = @transform_9, window_bounds = array<i64: 8, 128>}]} {
    %c0 = arith.constant 0 : index
    %c0_0 = arith.constant 0 : index
    %0 = vector.load %arg1[%c0, %c0_0] : memref<8x1024xbf16, #tpu.memory_space<vmem>>, vector<8x1024xbf16>
    %c0_1 = arith.constant 0 : index
    %c0_2 = arith.constant 0 : index
    %1 = vector.load %arg2[%c0_1, %c0_2] : memref<1024x512xbf16, #tpu.memory_space<vmem>>, vector<1024x512xbf16>
    %cst = arith.constant dense<0.000000e+00> : vector<8x512xf32>
    %2 = tpu.matmul %0, %1, %cst {dimension_numbers = #tpu.dot_dimension_numbers<[1], [0], [0], [1], [0, 0, 1, 1], [], []>} : vector<8x1024xbf16>, vector<1024x512xbf16>, vector<8x512xf32> -> vector<8x512xf32>
    %c0_3 = arith.constant 0 : index
    %c0_4 = arith.constant 0 : index
    %3 = vector.load %arg3[%c0_3, %c0_4] : memref<1x512xf32, #tpu.memory_space<vmem>>, vector<1x512xf32>
    %4 = vector.broadcast %3 : vector<1x512xf32> to vector<8x512xf32>
    %5 = arith.addf %2, %4 : vector<8x512xf32>
    %cst_5 = arith.constant 0.000000e+00 : f32
    %6 = vector.broadcast %cst_5 : f32 to vector<8x512xf32>
    %7 = arith.maximumf %5, %6 : vector<8x512xf32>
    %8 = arith.truncf %7 : vector<8x512xf32> to vector<8x512xbf16>
    %c0_6 = arith.constant 0 : index
    %c0_7 = arith.constant 0 : index
    %9 = vector.load %arg4[%c0_6, %c0_7] : memref<512x256xbf16, #tpu.memory_space<vmem>>, vector<512x256xbf16>
    %cst_8 = arith.constant dense<0.000000e+00> : vector<8x256xf32>
    %10 = tpu.matmul %8, %9, %cst_8 {dimension_numbers = #tpu.dot_dimension_numbers<[1], [0], [0], [1], [0, 0, 1, 1], [], []>} : vector<8x512xbf16>, vector<512x256xbf16>, vector<8x256xf32> -> vector<8x256xf32>
    %c0_9 = arith.constant 0 : index
    %c0_10 = arith.constant 0 : index
    %11 = vector.load %arg5[%c0_9, %c0_10] : memref<1x256xf32, #tpu.memory_space<vmem>>, vector<1x256xf32>
    %12 = vector.broadcast %11 : vector<1x256xf32> to vector<8x256xf32>
    %13 = arith.addf %10, %12 : vector<8x256xf32>
    %cst_11 = arith.constant 0.000000e+00 : f32
    %14 = vector.broadcast %cst_11 : f32 to vector<8x256xf32>
    %15 = arith.maximumf %13, %14 : vector<8x256xf32>
    %16 = arith.truncf %15 : vector<8x256xf32> to vector<8x256xbf16>
    %c0_12 = arith.constant 0 : index
    %c0_13 = arith.constant 0 : index
    %17 = vector.load %arg6[%c0_12, %c0_13] : memref<256x128xbf16, #tpu.memory_space<vmem>>, vector<256x128xbf16>
    %cst_14 = arith.constant dense<0.000000e+00> : vector<8x128xf32>
    %18 = tpu.matmul %16, %17, %cst_14 {dimension_numbers = #tpu.dot_dimension_numbers<[1], [0], [0], [1], [0, 0, 1, 1], [], []>} : vector<8x256xbf16>, vector<256x128xbf16>, vector<8x128xf32> -> vector<8x128xf32>
    %c0_15 = arith.constant 0 : index
    %c0_16 = arith.constant 0 : index
    %19 = vector.load %arg7[%c0_15, %c0_16] : memref<1x128xf32, #tpu.memory_space<vmem>>, vector<1x128xf32>
    %20 = vector.broadcast %19 : vector<1x128xf32> to vector<8x128xf32>
    %21 = arith.addf %18, %20 : vector<8x128xf32>
    %cst_17 = arith.constant 0.000000e+00 : f32
    %22 = vector.broadcast %cst_17 : f32 to vector<8x128xf32>
    %23 = arith.maximumf %21, %22 : vector<8x128xf32>
    %24 = arith.truncf %23 : vector<8x128xf32> to vector<8x128xbf16>
    %c0_18 = arith.constant 0 : index
    %c0_19 = arith.constant 0 : index
    %25 = vector.load %arg8[%c0_18, %c0_19] : memref<128x128xbf16, #tpu.memory_space<vmem>>, vector<128x128xbf16>
    %cst_20 = arith.constant dense<0.000000e+00> : vector<8x128xf32>
    %26 = tpu.matmul %24, %25, %cst_20 {dimension_numbers = #tpu.dot_dimension_numbers<[1], [0], [0], [1], [0, 0, 1, 1], [], []>} : vector<8x128xbf16>, vector<128x128xbf16>, vector<8x128xf32> -> vector<8x128xf32>
    %c0_21 = arith.constant 0 : index
    %c0_22 = arith.constant 0 : index
    %27 = vector.load %arg9[%c0_21, %c0_22] : memref<1x128xf32, #tpu.memory_space<vmem>>, vector<1x128xf32>
    %28 = vector.broadcast %27 : vector<1x128xf32> to vector<8x128xf32>
    %29 = arith.addf %26, %28 : vector<8x128xf32>
    %cst_23 = arith.constant 0.000000e+00 : f32
    %30 = vector.broadcast %cst_23 : f32 to vector<8x128xf32>
    %31 = arith.subf %30, %29 : vector<8x128xf32>
    %32 = math.exp %31 : vector<8x128xf32>
    %cst_24 = arith.constant 1.000000e+00 : f32
    %33 = vector.broadcast %cst_24 : f32 to vector<8x128xf32>
    %34 = arith.addf %33, %32 : vector<8x128xf32>
    %35 = tpu.reciprocal %34 {approx = true} : vector<8x128xf32> -> vector<8x128xf32>
    %c0_25 = arith.constant 0 : index
    %c0_26 = arith.constant 0 : index
    %36 = vector.load %arg10[%c0_25, %c0_26] : memref<8x128xf32, #tpu.memory_space<vmem>>, vector<8x128xf32>
    tpu.vector_store %arg10[%c0_25, %c0_26], %35 {strides = array<i32>} : memref<8x128xf32, #tpu.memory_space<vmem>>, vector<8x128xf32>,
    return
  }
  func.func @transform_0(%arg0: i32) -> (i32, i32) {
    %c0_i32 = arith.constant 0 : i32
    %c0_i32_0 = arith.constant 0 : i32
    return %arg0, %c0_i32 : i32, i32
  }
  func.func @transform_1(%arg0: i32) -> (i32, i32) {
    %c0_i32 = arith.constant 0 : i32
    %c0_i32_0 = arith.constant 0 : i32
    %c0_i32_1 = arith.constant 0 : i32
    return %c0_i32, %c0_i32_0 : i32, i32
  }
  func.func @transform_2(%arg0: i32) -> (i32, i32) {
    %c0_i32 = arith.constant 0 : i32
    %c0_i32_0 = arith.constant 0 : i32
    %c0_i32_1 = arith.constant 0 : i32
    return %c0_i32, %c0_i32_0 : i32, i32
  }
  func.func @transform_3(%arg0: i32) -> (i32, i32) {
    %c0_i32 = arith.constant 0 : i32
    %c0_i32_0 = arith.constant 0 : i32
    %c0_i32_1 = arith.constant 0 : i32
    return %c0_i32, %c0_i32_0 : i32, i32
  }
  func.func @transform_4(%arg0: i32) -> (i32, i32) {
    %c0_i32 = arith.constant 0 : i32
    %c0_i32_0 = arith.constant 0 : i32
    %c0_i32_1 = arith.constant 0 : i32
    return %c0_i32, %c0_i32_0 : i32, i32
  }
  func.func @transform_5(%arg0: i32) -> (i32, i32) {
    %c0_i32 = arith.constant 0 : i32
    %c0_i32_0 = arith.constant 0 : i32
    %c0_i32_1 = arith.constant 0 : i32
    return %c0_i32, %c0_i32_0 : i32, i32
  }
  func.func @transform_6(%arg0: i32) -> (i32, i32) {
    %c0_i32 = arith.constant 0 : i32
    %c0_i32_0 = arith.constant 0 : i32
    %c0_i32_1 = arith.constant 0 : i32
    return %c0_i32, %c0_i32_0 : i32, i32
  }
  func.func @transform_7(%arg0: i32) -> (i32, i32) {
    %c0_i32 = arith.constant 0 : i32
    %c0_i32_0 = arith.constant 0 : i32
    %c0_i32_1 = arith.constant 0 : i32
    return %c0_i32, %c0_i32_0 : i32, i32
  }
  func.func @transform_8(%arg0: i32) -> (i32, i32) {
    %c0_i32 = arith.constant 0 : i32
    %c0_i32_0 = arith.constant 0 : i32
    %c0_i32_1 = arith.constant 0 : i32
    return %c0_i32, %c0_i32_0 : i32, i32
  }
  func.func @transform_9(%arg0: i32) -> (i32, i32) {
    %c0_i32 = arith.constant 0 : i32
    %c0_i32_0 = arith.constant 0 : i32
    return %arg0, %c0_i32 : i32, i32
  }
}

</mosaic_0001>

<llo_original>
// kernel: tpu_custom_call.1
$region0: #{tpu_custom_call.1}
  #allocation0 [shape = 'u32[]', space=smem, size = 0x4, offset = 0x4, fixed_abs, tag = 'smem constant byte address 0x4 - core index']
  #allocation1 [shape = 'u32[144,128]{1,0:T(1,128)}', space=vmem, size = 0x12000, scoped, tag = 'internal scratch']
  %s0 = inlined_call_operand.hbm [shape: bf16[8,1024], index: 0, kind: input, shape index: {}]
  %s1 = inlined_call_operand.hbm [shape: bf16[1024,512], index: 1, kind: input, shape index: {}]
  %s2 = inlined_call_operand.hbm [shape: f32[1,512], index: 2, kind: input, shape index: {}]
  %s3 = inlined_call_operand.hbm [shape: bf16[512,256], index: 3, kind: input, shape index: {}]
  %s4 = inlined_call_operand.hbm [shape: f32[1,256], index: 4, kind: input, shape index: {}]
  %s5 = inlined_call_operand.hbm [shape: bf16[256,128], index: 5, kind: input, shape index: {}]
  %s6 = inlined_call_operand.hbm [shape: f32[1,128], index: 6, kind: input, shape index: {}]
  %s7 = inlined_call_operand.hbm [shape: bf16[128,128], index: 7, kind: input, shape index: {}]
  %s8 = inlined_call_operand.hbm [shape: f32[1,128], index: 8, kind: input, shape index: {}]
  %s9 = inlined_call_operand.hbm [shape: f32[8,128], index: 9, kind: output, shape index: {}]
  %s10 = sld [smem:[#allocation0]]
  $region82: #{tpu_custom_call.1} parent=0
    _
  %s12 = ssub.s32 1, %s10
  %s13 = scalar_select 0, %s12, %s10
  $region1: #{tpu_custom_call.1} parent=0
    #allocation2 [shape = 'u8[16384]{0}', space=vmem, size = 0x4000, scoped, tag = 'input window, operand 0, single buffered']
    #allocation3 [shape = 's32[1]{0}', space=sflag, size = 0x4, scoped, tag = 'scoped memory for tpu_custom_call.1']
    #allocation4 [shape = 's32[1]{0}', space=sflag, size = 0x4, scoped, tag = 'scoped memory for tpu_custom_call.1']
    #allocation5 [shape = 'u8[1048576]{0}', space=vmem, size = 0x100000, scoped, tag = 'input window, operand 1, single buffered']
    #allocation6 [shape = 's32[1]{0}', space=sflag, size = 0x4, scoped, tag = 'scoped memory for tpu_custom_call.1']
    #allocation7 [shape = 'u8[2048]{0}', space=vmem, size = 0x800, scoped, tag = 'input window, operand 2, single buffered']
    #allocation8 [shape = 'u8[262144]{0}', space=vmem, size = 0x40000, scoped, tag = 'input window, operand 3, single buffered']
    #allocation9 [shape = 's32[1]{0}', space=sflag, size = 0x4, scoped, tag = 'scoped memory for tpu_custom_call.1']
    #allocation10 [shape = 'u8[1024]{0}', space=vmem, size = 0x400, scoped, tag = 'input window, operand 4, single buffered']
    #allocation11 [shape = 'u8[65536]{0}', space=vmem, size = 0x10000, scoped, tag = 'input window, operand 5, single buffered']
    #allocation12 [shape = 's32[1]{0}', space=sflag, size = 0x4, scoped, tag = 'scoped memory for tpu_custom_call.1']
    #allocation13 [shape = 'u8[512]{0}', space=vmem, size = 0x400, scoped, tag = 'input window, operand 6, single buffered']
    #allocation14 [shape = 'u8[32768]{0}', space=vmem, size = 0x8000, scoped, tag = 'input window, operand 7, single buffered']
    #allocation15 [shape = 's32[1]{0}', space=sflag, size = 0x4, scoped, tag = 'scoped memory for tpu_custom_call.1']
    #allocation16 [shape = 'u8[512]{0}', space=vmem, size = 0x400, scoped, tag = 'input window, operand 8, single buffered']
    #allocation17 [shape = 'u8[4096]{0}', space=vmem, size = 0x1000, scoped, tag = 'output window, operand 0, single buffered']
    %14 = vsyncpa [#allocation3], 0
    %15 = vsyncpa [#allocation6], 0
    %16 = vsyncpa [#allocation9], 0
    %17 = vsyncpa [#allocation12], 0
    %18 = vsyncpa [#allocation15], 0
    %19 = vsyncpa [#allocation4], 0
    // Predicated region
    $region2: #{tpu_custom_call.1} parent=1 // pred_check
      _
    $region3: #{tpu_custom_call.1} parent=1 // pred_check_branch
      %21 = sbr.rel (0) target = $region5
    $region4: #{tpu_custom_call.1} parent=1 // pred_region
      %s23 = ssub.s32 512, 512
      %24 = vsyncadd [#allocation3], %s23
      %s26 = sshll.u32 [#allocation2], 4
      %s27 = int_to_ptr.vmem [resolvable:$true] %s26
      %29 = dma.hbm_to_vmem [thread:$0]  %s0, 512, %s27, [#allocation3]
    $region5: #{tpu_custom_call.1} parent=1 // pred_fallthru
      _
    // Predicated region
    $region6: #{tpu_custom_call.1} parent=1 // pred_check
      _
    $region7: #{tpu_custom_call.1} parent=1 // pred_check_branch
      %31 = sbr.rel (0) target = $region9
    $region8: #{tpu_custom_call.1} parent=1 // pred_region
      %s33 = ssub.s32 32768, 32768
      %34 = vsyncadd [#allocation6], %s33
      %s35 = sshll.u32 [#allocation5], 4
      %s36 = int_to_ptr.vmem [resolvable:$true] %s35
      %41 = dma.hbm_to_vmem [thread:$0]  %s1, 32768, %s36, [#allocation6], 256, 256, 16
    $region9: #{tpu_custom_call.1} parent=1 // pred_fallthru
      _
    // Predicated region
    $region10: #{tpu_custom_call.1} parent=1 // pred_check
      _
    $region11: #{tpu_custom_call.1} parent=1 // pred_check_branch
      %43 = sbr.rel (0) target = $region13
    $region12: #{tpu_custom_call.1} parent=1 // pred_region
      %s45 = ssub.s32 64, 64
      %46 = vsyncadd [#allocation6], %s45
      %s48 = sshll.u32 [#allocation7], 4
      %s49 = int_to_ptr.vmem [resolvable:$true] %s48
      %51 = dma.hbm_to_vmem [thread:$0]  %s2, 64, %s49, [#allocation6]
    $region13: #{tpu_custom_call.1} parent=1 // pred_fallthru
      _
    // Predicated region
    $region14: #{tpu_custom_call.1} parent=1 // pred_check
      _
    $region15: #{tpu_custom_call.1} parent=1 // pred_check_branch
      %53 = sbr.rel (0) target = $region17
    $region16: #{tpu_custom_call.1} parent=1 // pred_region
      %s55 = ssub.s32 8192, 8192
      %56 = vsyncadd [#allocation9], %s55
      %s57 = sshll.u32 [#allocation8], 4
      %s58 = int_to_ptr.vmem [resolvable:$true] %s57
      %63 = dma.hbm_to_vmem [thread:$0]  %s3, 8192, %s58, [#allocation9], 128, 128, 8
    $region17: #{tpu_custom_call.1} parent=1 // pred_fallthru
      _
    // Predicated region
    $region18: #{tpu_custom_call.1} parent=1 // pred_check
      _
    $region19: #{tpu_custom_call.1} parent=1 // pred_check_branch
      %65 = sbr.rel (0) target = $region21
    $region20: #{tpu_custom_call.1} parent=1 // pred_region
      %s67 = ssub.s32 32, 32
      %68 = vsyncadd [#allocation9], %s67
      %s70 = sshll.u32 [#allocation10], 4
      %s71 = int_to_ptr.vmem [resolvable:$true] %s70
      %73 = dma.hbm_to_vmem [thread:$0]  %s4, 32, %s71, [#allocation9]
    $region21: #{tpu_custom_call.1} parent=1 // pred_fallthru
      _
    // Predicated region
    $region22: #{tpu_custom_call.1} parent=1 // pred_check
      _
    $region23: #{tpu_custom_call.1} parent=1 // pred_check_branch
      %75 = sbr.rel (0) target = $region25
    $region24: #{tpu_custom_call.1} parent=1 // pred_region
      %s77 = ssub.s32 2048, 2048
      %78 = vsyncadd [#allocation12], %s77
      %s79 = sshll.u32 [#allocation11], 4
      %s80 = int_to_ptr.vmem [resolvable:$true] %s79
      %85 = dma.hbm_to_vmem [thread:$0]  %s5, 2048, %s80, [#allocation12], 64, 64, 4
    $region25: #{tpu_custom_call.1} parent=1 // pred_fallthru
      _
    // Predicated region
    $region26: #{tpu_custom_call.1} parent=1 // pred_check
      _
    $region27: #{tpu_custom_call.1} parent=1 // pred_check_branch
      %87 = sbr.rel (0) target = $region29
    $region28: #{tpu_custom_call.1} parent=1 // pred_region
      %s89 = ssub.s32 16, 16
      %90 = vsyncadd [#allocation12], %s89
      %s92 = sshll.u32 [#allocation13], 4
      %s93 = int_to_ptr.vmem [resolvable:$true] %s92
      %95 = dma.hbm_to_vmem [thread:$0]  %s6, 16, %s93, [#allocation12]
    $region29: #{tpu_custom_call.1} parent=1 // pred_fallthru
      _
    // Predicated region
    $region30: #{tpu_custom_call.1} parent=1 // pred_check
      _
    $region31: #{tpu_custom_call.1} parent=1 // pred_check_branch
      %97 = sbr.rel (0) target = $region33
    $region32: #{tpu_custom_call.1} parent=1 // pred_region
      %s99 = ssub.s32 1024, 1024
      %100 = vsyncadd [#allocation15], %s99
      %s101 = sshll.u32 [#allocation14], 4
      %s102 = int_to_ptr.vmem [resolvable:$true] %s101
      %107 = dma.hbm_to_vmem [thread:$0]  %s7, 1024, %s102, [#allocation15], 64, 64, 4
    $region33: #{tpu_custom_call.1} parent=1 // pred_fallthru
      _
    // Predicated region
    $region34: #{tpu_custom_call.1} parent=1 // pred_check
      _
    $region35: #{tpu_custom_call.1} parent=1 // pred_check_branch
      %109 = sbr.rel (0) target = $region37
    $region36: #{tpu_custom_call.1} parent=1 // pred_region
      %s111 = ssub.s32 16, 16
      %112 = vsyncadd [#allocation15], %s111
      %s114 = sshll.u32 [#allocation16], 4
      %s115 = int_to_ptr.vmem [resolvable:$true] %s114
      %117 = dma.hbm_to_vmem [thread:$0]  %s8, 16, %s115, [#allocation15]
    $region37: #{tpu_custom_call.1} parent=1 // pred_fallthru
      _
    // Predicated region
    $region38: #{tpu_custom_call.1} parent=1 // pred_check
      _
    $region39: #{tpu_custom_call.1} parent=1 // pred_check_branch
      %119 = sbr.rel (0) target = $region41
    $region40: #{tpu_custom_call.1} parent=1 // pred_region
      %120 = dma.done [#allocation3], 512
    $region41: #{tpu_custom_call.1} parent=1 // pred_fallthru
      _
    // Predicated region
    $region42: #{tpu_custom_call.1} parent=1 // pred_check
      _
    $region43: #{tpu_custom_call.1} parent=1 // pred_check_branch
      %122 = sbr.rel (0) target = $region45
    $region44: #{tpu_custom_call.1} parent=1 // pred_region
      %123 = dma.done [#allocation6], 32768
    $region45: #{tpu_custom_call.1} parent=1 // pred_fallthru
      _
    // Predicated region
    $region46: #{tpu_custom_call.1} parent=1 // pred_check
      _
    $region47: #{tpu_custom_call.1} parent=1 // pred_check_branch
      %125 = sbr.rel (0) target = $region49
    $region48: #{tpu_custom_call.1} parent=1 // pred_region
      %126 = dma.done [#allocation6], 64
    $region49: #{tpu_custom_call.1} parent=1 // pred_fallthru
      _
    // Predicated region
    $region50: #{tpu_custom_call.1} parent=1 // pred_check
      _
    $region51: #{tpu_custom_call.1} parent=1 // pred_check_branch
      %128 = sbr.rel (0) target = $region53
    $region52: #{tpu_custom_call.1} parent=1 // pred_region
      %129 = dma.done [#allocation9], 8192
    $region53: #{tpu_custom_call.1} parent=1 // pred_fallthru
      _
    // Predicated region
    $region54: #{tpu_custom_call.1} parent=1 // pred_check
      _
    $region55: #{tpu_custom_call.1} parent=1 // pred_check_branch
      %131 = sbr.rel (0) target = $region57
    $region56: #{tpu_custom_call.1} parent=1 // pred_region
      %132 = dma.done [#allocation9], 32
    $region57: #{tpu_custom_call.1} parent=1 // pred_fallthru
      _
    // Predicated region
    $region58: #{tpu_custom_call.1} parent=1 // pred_check
      _
    $region59: #{tpu_custom_call.1} parent=1 // pred_check_branch
      %134 = sbr.rel (0) target = $region61
    $region60: #{tpu_custom_call.1} parent=1 // pred_region
      %135 = dma.done [#allocation12], 2048
    $region61: #{tpu_custom_call.1} parent=1 // pred_fallthru
      _
    // Predicated region
    $region62: #{tpu_custom_call.1} parent=1 // pred_check
      _
    $region63: #{tpu_custom_call.1} parent=1 // pred_check_branch
      %137 = sbr.rel (0) target = $region65
    $region64: #{tpu_custom_call.1} parent=1 // pred_region
      %138 = dma.done [#allocation12], 16
    $region65: #{tpu_custom_call.1} parent=1 // pred_fallthru
      _
    // Predicated region
    $region66: #{tpu_custom_call.1} parent=1 // pred_check
      _
    $region67: #{tpu_custom_call.1} parent=1 // pred_check_branch
      %140 = sbr.rel (0) target = $region69
    $region68: #{tpu_custom_call.1} parent=1 // pred_region
      %141 = dma.done [#allocation15], 1024
    $region69: #{tpu_custom_call.1} parent=1 // pred_fallthru
      _
    // Predicated region
    $region70: #{tpu_custom_call.1} parent=1 // pred_check
      _
    $region71: #{tpu_custom_call.1} parent=1 // pred_check_branch
      %143 = sbr.rel (0) target = $region73
    $region72: #{tpu_custom_call.1} parent=1 // pred_region
      %144 = dma.done [#allocation15], 16
    $region73: #{tpu_custom_call.1} parent=1 // pred_fallthru
      _
    %v146 = vld [vmem:[#allocation2] sm:$0xff]
    %v147 = vld [vmem:[#allocation2 + $0x8] sm:$0xff]
    %v148 = vld [vmem:[#allocation2 + $0x10] sm:$0xff]
    %v149 = vld [vmem:[#allocation2 + $0x18] sm:$0xff]
    %v150 = vld [vmem:[#allocation5] sm:$0xff]
    %v151 = vld [vmem:[#allocation5 + $0x8] sm:$0xff]
    %v152 = vld [vmem:[#allocation5 + $0x10] sm:$0xff]
    %v153 = vld [vmem:[#allocation5 + $0x18] sm:$0xff]
    %v154 = vld [vmem:[#allocation5 + $0x20] sm:$0xff]
    %v155 = vld [vmem:[#allocation5 + $0x28] sm:$0xff]
    %v156 = vld [vmem:[#allocation5 + $0x30] sm:$0xff]
    %v157 = vld [vmem:[#allocation5 + $0x38] sm:$0xff]
    %v158 = vld [vmem:[#allocation5 + $0x40] sm:$0xff]
    %v159 = vld [vmem:[#allocation5 + $0x48] sm:$0xff]
    %v160 = vld [vmem:[#allocation5 + $0x50] sm:$0xff]
    %v161 = vld [vmem:[#allocation5 + $0x58] sm:$0xff]
    %v162 = vld [vmem:[#allocation5 + $0x60] sm:$0xff]
    %v163 = vld [vmem:[#allocation5 + $0x68] sm:$0xff]
    %v164 = vld [vmem:[#allocation5 + $0x70] sm:$0xff]
    %v165 = vld [vmem:[#allocation5 + $0x78] sm:$0xff]
    %v166 = vld [vmem:[#allocation5 + $0x80] sm:$0xff]
    %v167 = vld [vmem:[#allocation5 + $0x88] sm:$0xff]
    %v168 = vld [vmem:[#allocation5 + $0x90] sm:$0xff]
    %v169 = vld [vmem:[#allocation5 + $0x98] sm:$0xff]
    %v170 = vld [vmem:[#allocation5 + $0xa0] sm:$0xff]
    %v171 = vld [vmem:[#allocation5 + $0xa8] sm:$0xff]
    %v172 = vld [vmem:[#allocation5 + $0xb0] sm:$0xff]
    %v173 = vld [vmem:[#allocation5 + $0xb8] sm:$0xff]
    %v174 = vld [vmem:[#allocation5 + $0xc0] sm:$0xff]
    %v175 = vld [vmem:[#allocation5 + $0xc8] sm:$0xff]
    %v176 = vld [vmem:[#allocation5 + $0xd0] sm:$0xff]
    %v177 = vld [vmem:[#allocation5 + $0xd8] sm:$0xff]
    %v178 = vld [vmem:[#allocation5 + $0xe0] sm:$0xff]
    %v179 = vld [vmem:[#allocation5 + $0xe8] sm:$0xff]
    %v180 = vld [vmem:[#allocation5 + $0xf0] sm:$0xff]
    %v181 = vld [vmem:[#allocation5 + $0xf8] sm:$0xff]
    %v182 = vld [vmem:[#allocation5 + $0x100] sm:$0xff]
    %v183 = vld [vmem:[#allocation5 + $0x108] sm:$0xff]
    %v184 = vld [vmem:[#allocation5 + $0x110] sm:$0xff]
    %v185 = vld [vmem:[#allocation5 + $0x118] sm:$0xff]
    %v186 = vld [vmem:[#allocation5 + $0x120] sm:$0xff]
    %v187 = vld [vmem:[#allocation5 + $0x128] sm:$0xff]
    %v188 = vld [vmem:[#allocation5 + $0x130] sm:$0xff]
    %v189 = vld [vmem:[#allocation5 + $0x138] sm:$0xff]
    %v190 = vld [vmem:[#allocation5 + $0x140] sm:$0xff]
    %v191 = vld [vmem:[#allocation5 + $0x148] sm:$0xff]
    %v192 = vld [vmem:[#allocation5 + $0x150] sm:$0xff]
    %v193 = vld [vmem:[#allocation5 + $0x158] sm:$0xff]
    %v194 = vld [vmem:[#allocation5 + $0x160] sm:$0xff]
    %v195 = vld [vmem:[#allocation5 + $0x168] sm:$0xff]
    %v196 = vld [vmem:[#allocation5 + $0x170] sm:$0xff]
    %v197 = vld [vmem:[#allocation5 + $0x178] sm:$0xff]
    %v198 = vld [vmem:[#allocation5 + $0x180] sm:$0xff]
    %v199 = vld [vmem:[#allocation5 + $0x188] sm:$0xff]
    %v200 = vld [vmem:[#allocation5 + $0x190] sm:$0xff]
    %v201 = vld [vmem:[#allocation5 + $0x198] sm:$0xff]
    %v202 = vld [vmem:[#allocation5 + $0x1a0] sm:$0xff]
    %v203 = vld [vmem:[#allocation5 + $0x1a8] sm:$0xff]
    %v204 = vld [vmem:[#allocation5 + $0x1b0] sm:$0xff]
    %v205 = vld [vmem:[#allocation5 + $0x1b8] sm:$0xff]
    %v206 = vld [vmem:[#allocation5 + $0x1c0] sm:$0xff]
    %v207 = vld [vmem:[#allocation5 + $0x1c8] sm:$0xff]
    %v208 = vld [vmem:[#allocation5 + $0x1d0] sm:$0xff]
    %v209 = vld [vmem:[#allocation5 + $0x1d8] sm:$0xff]
    %v210 = vld [vmem:[#allocation5 + $0x1e0] sm:$0xff]
    %v211 = vld [vmem:[#allocation5 + $0x1e8] sm:$0xff]
    %v212 = vld [vmem:[#allocation5 + $0x1f0] sm:$0xff]
    %v213 = vld [vmem:[#allocation5 + $0x1f8] sm:$0xff]
    %v214 = vld [vmem:[#allocation5 + $0x200] sm:$0xff]
    %v215 = vld [vmem:[#allocation5 + $0x208] sm:$0xff]
    %v216 = vld [vmem:[#allocation5 + $0x210] sm:$0xff]
    %v217 = vld [vmem:[#allocation5 + $0x218] sm:$0xff]
    %v218 = vld [vmem:[#allocation5 + $0x220] sm:$0xff]
    %v219 = vld [vmem:[#allocation5 + $0x228] sm:$0xff]
    %v220 = vld [vmem:[#allocation5 + $0x230] sm:$0xff]
    %v221 = vld [vmem:[#allocation5 + $0x238] sm:$0xff]
    %v222 = vld [vmem:[#allocation5 + $0x240] sm:$0xff]
    %v223 = vld [vmem:[#allocation5 + $0x248] sm:$0xff]
    %v224 = vld [vmem:[#allocation5 + $0x250] sm:$0xff]
    %v225 = vld [vmem:[#allocation5 + $0x258] sm:$0xff]
    %v226 = vld [vmem:[#allocation5 + $0x260] sm:$0xff]
    %v227 = vld [vmem:[#allocation5 + $0x268] sm:$0xff]
    %v228 = vld [vmem:[#allocation5 + $0x270] sm:$0xff]
    %v229 = vld [vmem:[#allocation5 + $0x278] sm:$0xff]
    %v230 = vld [vmem:[#allocation5 + $0x280] sm:$0xff]
    %v231 = vld [vmem:[#allocation5 + $0x288] sm:$0xff]
    %v232 = vld [vmem:[#allocation5 + $0x290] sm:$0xff]
    %v233 = vld [vmem:[#allocation5 + $0x298] sm:$0xff]
    %v234 = vld [vmem:[#allocation5 + $0x2a0] sm:$0xff]
    %v235 = vld [vmem:[#allocation5 + $0x2a8] sm:$0xff]
    %v236 = vld [vmem:[#allocation5 + $0x2b0] sm:$0xff]
    %v237 = vld [vmem:[#allocation5 + $0x2b8] sm:$0xff]
    %v238 = vld [vmem:[#allocation5 + $0x2c0] sm:$0xff]
    %v239 = vld [vmem:[#allocation5 + $0x2c8] sm:$0xff]
    %v240 = vld [vmem:[#allocation5 + $0x2d0] sm:$0xff]
    %v241 = vld [vmem:[#allocation5 + $0x2d8] sm:$0xff]
    %v242 = vld [vmem:[#allocation5 + $0x2e0] sm:$0xff]
    %v243 = vld [vmem:[#allocation5 + $0x2e8] sm:$0xff]
    %v244 = vld [vmem:[#allocation5 + $0x2f0] sm:$0xff]
    %v245 = vld [vmem:[#allocation5 + $0x2f8] sm:$0xff]
    %v246 = vld [vmem:[#allocation5 + $0x300] sm:$0xff]
    %v247 = vld [vmem:[#allocation5 + $0x308] sm:$0xff]
    %v248 = vld [vmem:[#allocation5 + $0x310] sm:$0xff]
    %v249 = vld [vmem:[#allocation5 + $0x318] sm:$0xff]
    %v250 = vld [vmem:[#allocation5 + $0x320] sm:$0xff]
    %v251 = vld [vmem:[#allocation5 + $0x328] sm:$0xff]
    %v252 = vld [vmem:[#allocation5 + $0x330] sm:$0xff]
    %v253 = vld [vmem:[#allocation5 + $0x338] sm:$0xff]
    %v254 = vld [vmem:[#allocation5 + $0x340] sm:$0xff]
    %v255 = vld [vmem:[#allocation5 + $0x348] sm:$0xff]
    %v256 = vld [vmem:[#allocation5 + $0x350] sm:$0xff]
    %v257 = vld [vmem:[#allocation5 + $0x358] sm:$0xff]
    %v258 = vld [vmem:[#allocation5 + $0x360] sm:$0xff]
    %v259 = vld [vmem:[#allocation5 + $0x368] sm:$0xff]
    %v260 = vld [vmem:[#allocation5 + $0x370] sm:$0xff]
    %v261 = vld [vmem:[#allocation5 + $0x378] sm:$0xff]
    %v262 = vld [vmem:[#allocation5 + $0x380] sm:$0xff]
    %v263 = vld [vmem:[#allocation5 + $0x388] sm:$0xff]
    %v264 = vld [vmem:[#allocation5 + $0x390] sm:$0xff]
    %v265 = vld [vmem:[#allocation5 + $0x398] sm:$0xff]
    %v266 = vld [vmem:[#allocation5 + $0x3a0] sm:$0xff]
    %v267 = vld [vmem:[#allocation5 + $0x3a8] sm:$0xff]
    %v268 = vld [vmem:[#allocation5 + $0x3b0] sm:$0xff]
    %v269 = vld [vmem:[#allocation5 + $0x3b8] sm:$0xff]
    %v270 = vld [vmem:[#allocation5 + $0x3c0] sm:$0xff]
    %v271 = vld [vmem:[#allocation5 + $0x3c8] sm:$0xff]
    %v272 = vld [vmem:[#allocation5 + $0x3d0] sm:$0xff]
    %v273 = vld [vmem:[#allocation5 + $0x3d8] sm:$0xff]
    %v274 = vld [vmem:[#allocation5 + $0x3e0] sm:$0xff]
    %v275 = vld [vmem:[#allocation5 + $0x3e8] sm:$0xff]
    %v276 = vld [vmem:[#allocation5 + $0x3f0] sm:$0xff]
    %v277 = vld [vmem:[#allocation5 + $0x3f8] sm:$0xff]
    %v278 = vld [vmem:[#allocation5 + $0x400] sm:$0xff]
    %v279 = vld [vmem:[#allocation5 + $0x408] sm:$0xff]
    %v280 = vld [vmem:[#allocation5 + $0x410] sm:$0xff]
    %v281 = vld [vmem:[#allocation5 + $0x418] sm:$0xff]
    %v282 = vld [vmem:[#allocation5 + $0x420] sm:$0xff]
    %v283 = vld [vmem:[#allocation5 + $0x428] sm:$0xff]
    %v284 = vld [vmem:[#allocation5 + $0x430] sm:$0xff]
    %v285 = vld [vmem:[#allocation5 + $0x438] sm:$0xff]
    %v286 = vld [vmem:[#allocation5 + $0x440] sm:$0xff]
    %v287 = vld [vmem:[#allocation5 + $0x448] sm:$0xff]
    %v288 = vld [vmem:[#allocation5 + $0x450] sm:$0xff]
    %v289 = vld [vmem:[#allocation5 + $0x458] sm:$0xff]
    %v290 = vld [vmem:[#allocation5 + $0x460] sm:$0xff]
    %v291 = vld [vmem:[#allocation5 + $0x468] sm:$0xff]
    %v292 = vld [vmem:[#allocation5 + $0x470] sm:$0xff]
    %v293 = vld [vmem:[#allocation5 + $0x478] sm:$0xff]
    %v294 = vld [vmem:[#allocation5 + $0x480] sm:$0xff]
    %v295 = vld [vmem:[#allocation5 + $0x488] sm:$0xff]
    %v296 = vld [vmem:[#allocation5 + $0x490] sm:$0xff]
    %v297 = vld [vmem:[#allocation5 + $0x498] sm:$0xff]
    %v298 = vld [vmem:[#allocation5 + $0x4a0] sm:$0xff]
    %v299 = vld [vmem:[#allocation5 + $0x4a8] sm:$0xff]
    %v300 = vld [vmem:[#allocation5 + $0x4b0] sm:$0xff]
    %v301 = vld [vmem:[#allocation5 + $0x4b8] sm:$0xff]
    %v302 = vld [vmem:[#allocation5 + $0x4c0] sm:$0xff]
    %v303 = vld [vmem:[#allocation5 + $0x4c8] sm:$0xff]
    %v304 = vld [vmem:[#allocation5 + $0x4d0] sm:$0xff]
    %v305 = vld [vmem:[#allocation5 + $0x4d8] sm:$0xff]
    %v306 = vld [vmem:[#allocation5 + $0x4e0] sm:$0xff]
    %v307 = vld [vmem:[#allocation5 + $0x4e8] sm:$0xff]
    %v308 = vld [vmem:[#allocation5 + $0x4f0] sm:$0xff]
    %v309 = vld [vmem:[#allocation5 + $0x4f8] sm:$0xff]
    %v310 = vld [vmem:[#allocation5 + $0x500] sm:$0xff]
    %v311 = vld [vmem:[#allocation5 + $0x508] sm:$0xff]
    %v312 = vld [vmem:[#allocation5 + $0x510] sm:$0xff]
    %v313 = vld [vmem:[#allocation5 + $0x518] sm:$0xff]
    %v314 = vld [vmem:[#allocation5 + $0x520] sm:$0xff]
    %v315 = vld [vmem:[#allocation5 + $0x528] sm:$0xff]
    %v316 = vld [vmem:[#allocation5 + $0x530] sm:$0xff]
    %v317 = vld [vmem:[#allocation5 + $0x538] sm:$0xff]
    %v318 = vld [vmem:[#allocation5 + $0x540] sm:$0xff]
    %v319 = vld [vmem:[#allocation5 + $0x548] sm:$0xff]
    %v320 = vld [vmem:[#allocation5 + $0x550] sm:$0xff]
    %v321 = vld [vmem:[#allocation5 + $0x558] sm:$0xff]
    %v322 = vld [vmem:[#allocation5 + $0x560] sm:$0xff]
    %v323 = vld [vmem:[#allocation5 + $0x568] sm:$0xff]
    %v324 = vld [vmem:[#allocation5 + $0x570] sm:$0xff]
    %v325 = vld [vmem:[#allocation5 + $0x578] sm:$0xff]
    %v326 = vld [vmem:[#allocation5 + $0x580] sm:$0xff]
    %v327 = vld [vmem:[#allocation5 + $0x588] sm:$0xff]
    %v328 = vld [vmem:[#allocation5 + $0x590] sm:$0xff]
    %v329 = vld [vmem:[#allocation5 + $0x598] sm:$0xff]
    %v330 = vld [vmem:[#allocation5 + $0x5a0] sm:$0xff]
    %v331 = vld [vmem:[#allocation5 + $0x5a8] sm:$0xff]
    %v332 = vld [vmem:[#allocation5 + $0x5b0] sm:$0xff]
    %v333 = vld [vmem:[#allocation5 + $0x5b8] sm:$0xff]
    %v334 = vld [vmem:[#allocation5 + $0x5c0] sm:$0xff]
    %v335 = vld [vmem:[#allocation5 + $0x5c8] sm:$0xff]
    %v336 = vld [vmem:[#allocation5 + $0x5d0] sm:$0xff]
    %v337 = vld [vmem:[#allocation5 + $0x5d8] sm:$0xff]
    %v338 = vld [vmem:[#allocation5 + $0x5e0] sm:$0xff]
    %v339 = vld [vmem:[#allocation5 + $0x5e8] sm:$0xff]
    %v340 = vld [vmem:[#allocation5 + $0x5f0] sm:$0xff]
    %v341 = vld [vmem:[#allocation5 + $0x5f8] sm:$0xff]
    %v342 = vld [vmem:[#allocation5 + $0x600] sm:$0xff]
    %v343 = vld [vmem:[#allocation5 + $0x608] sm:$0xff]
    %v344 = vld [vmem:[#allocation5 + $0x610] sm:$0xff]
    %v345 = vld [vmem:[#allocation5 + $0x618] sm:$0xff]
    %v346 = vld [vmem:[#allocation5 + $0x620] sm:$0xff]
    %v347 = vld [vmem:[#allocation5 + $0x628] sm:$0xff]
    %v348 = vld [vmem:[#allocation5 + $0x630] sm:$0xff]
    %v349 = vld [vmem:[#allocation5 + $0x638] sm:$0xff]
    %v350 = vld [vmem:[#allocation5 + $0x640] sm:$0xff]
    %v351 = vld [vmem:[#allocation5 + $0x648] sm:$0xff]
    %v352 = vld [vmem:[#allocation5 + $0x650] sm:$0xff]
    %v353 = vld [vmem:[#allocation5 + $0x658] sm:$0xff]
    %v354 = vld [vmem:[#allocation5 + $0x660] sm:$0xff]
    %v355 = vld [vmem:[#allocation5 + $0x668] sm:$0xff]
    %v356 = vld [vmem:[#allocation5 + $0x670] sm:$0xff]
    %v357 = vld [vmem:[#allocation5 + $0x678] sm:$0xff]
    %v358 = vld [vmem:[#allocation5 + $0x680] sm:$0xff]
    %v359 = vld [vmem:[#allocation5 + $0x688] sm:$0xff]
    %v360 = vld [vmem:[#allocation5 + $0x690] sm:$0xff]
    %v361 = vld [vmem:[#allocation5 + $0x698] sm:$0xff]
    %v362 = vld [vmem:[#allocation5 + $0x6a0] sm:$0xff]
    %v363 = vld [vmem:[#allocation5 + $0x6a8] sm:$0xff]
    %v364 = vld [vmem:[#allocation5 + $0x6b0] sm:$0xff]
    %v365 = vld [vmem:[#allocation5 + $0x6b8] sm:$0xff]
    %v366 = vld [vmem:[#allocation5 + $0x6c0] sm:$0xff]
    %v367 = vld [vmem:[#allocation5 + $0x6c8] sm:$0xff]
    %v368 = vld [vmem:[#allocation5 + $0x6d0] sm:$0xff]
    %v369 = vld [vmem:[#allocation5 + $0x6d8] sm:$0xff]
    %v370 = vld [vmem:[#allocation5 + $0x6e0] sm:$0xff]
    %v371 = vld [vmem:[#allocation5 + $0x6e8] sm:$0xff]
    %v372 = vld [vmem:[#allocation5 + $0x6f0] sm:$0xff]
    %v373 = vld [vmem:[#allocation5 + $0x6f8] sm:$0xff]
    %v374 = vld [vmem:[#allocation5 + $0x700] sm:$0xff]
    %v375 = vld [vmem:[#allocation5 + $0x708] sm:$0xff]
    %v376 = vld [vmem:[#allocation5 + $0x710] sm:$0xff]
    %v377 = vld [vmem:[#allocation5 + $0x718] sm:$0xff]
    %v378 = vld [vmem:[#allocation5 + $0x720] sm:$0xff]
    %v379 = vld [vmem:[#allocation5 + $0x728] sm:$0xff]
    %v380 = vld [vmem:[#allocation5 + $0x730] sm:$0xff]
    %v381 = vld [vmem:[#allocation5 + $0x738] sm:$0xff]
    %v382 = vld [vmem:[#allocation5 + $0x740] sm:$0xff]
    %v383 = vld [vmem:[#allocation5 + $0x748] sm:$0xff]
    %v384 = vld [vmem:[#allocation5 + $0x750] sm:$0xff]
    %v385 = vld [vmem:[#allocation5 + $0x758] sm:$0xff]
    %v386 = vld [vmem:[#allocation5 + $0x760] sm:$0xff]
    %v387 = vld [vmem:[#allocation5 + $0x768] sm:$0xff]
    %v388 = vld [vmem:[#allocation5 + $0x770] sm:$0xff]
    %v389 = vld [vmem:[#allocation5 + $0x778] sm:$0xff]
    %v390 = vld [vmem:[#allocation5 + $0x780] sm:$0xff]
    %v391 = vld [vmem:[#allocation5 + $0x788] sm:$0xff]
    %v392 = vld [vmem:[#allocation5 + $0x790] sm:$0xff]
    %v393 = vld [vmem:[#allocation5 + $0x798] sm:$0xff]
    %v394 = vld [vmem:[#allocation5 + $0x7a0] sm:$0xff]
    %v395 = vld [vmem:[#allocation5 + $0x7a8] sm:$0xff]
    %v396 = vld [vmem:[#allocation5 + $0x7b0] sm:$0xff]
    %v397 = vld [vmem:[#allocation5 + $0x7b8] sm:$0xff]
    %v398 = vld [vmem:[#allocation5 + $0x7c0] sm:$0xff]
    %v399 = vld [vmem:[#allocation5 + $0x7c8] sm:$0xff]
    %v400 = vld [vmem:[#allocation5 + $0x7d0] sm:$0xff]
    %v401 = vld [vmem:[#allocation5 + $0x7d8] sm:$0xff]
    %v402 = vld [vmem:[#allocation5 + $0x7e0] sm:$0xff]
    %v403 = vld [vmem:[#allocation5 + $0x7e8] sm:$0xff]
    %v404 = vld [vmem:[#allocation5 + $0x7f0] sm:$0xff]
    %v405 = vld [vmem:[#allocation5 + $0x7f8] sm:$0xff]
    %v406 = vld [vmem:[#allocation7] sm:$0xf]
    %v408 = vlaneseq
    %v409 = vshrl.u32 %v408, 7
    %v410 = vsub.s32 0, %v409
    %v411 = vrot.slane %v406, %v410
    %v412 = vlaneseq
    %v413 = vshrl.u32 %v412, 7
    %v414 = vsub.s32 1, %v413
    %v415 = vrot.slane %v406, %v414
    %v416 = vlaneseq
    %v417 = vshrl.u32 %v416, 7
    %v418 = vsub.s32 2, %v417
    %v419 = vrot.slane %v406, %v418
    %v420 = vlaneseq
    %v421 = vshrl.u32 %v420, 7
    %v422 = vsub.s32 3, %v421
    %v423 = vrot.slane %v406, %v422
    %v432 = vunpack.c.l.b16 %v146
    %v433 = vunpack.c.h.b16 %v146
    %v434 = vunpack.c.l.b16 %v147
    %v435 = vunpack.c.h.b16 %v147
    %v436 = vunpack.c.l.b16 %v148
    %v437 = vunpack.c.h.b16 %v148
    %v438 = vunpack.c.l.b16 %v149
    %v439 = vunpack.c.h.b16 %v149
    %v440 = vpack.c.b16 %v432, %v432
    %v441 = vpack.c.b16 %v433, %v433
    %v442 = vpack.c.b16 %v434, %v434
    %v443 = vpack.c.b16 %v435, %v435
    %v444 = vpack.c.b16 %v436, %v436
    %v445 = vpack.c.b16 %v437, %v437
    %v446 = vpack.c.b16 %v438, %v438
    %v447 = vpack.c.b16 %v439, %v439
    %v712 = vunpack.c.l.b16 %v150
    %v713 = vunpack.c.h.b16 %v150
    %v714 = vunpack.c.l.b16 %v151
    %v715 = vunpack.c.h.b16 %v151
    %v716 = vunpack.c.l.b16 %v152
    %v717 = vunpack.c.h.b16 %v152
    %v718 = vunpack.c.l.b16 %v153
    %v719 = vunpack.c.h.b16 %v153
    %v720 = vunpack.c.l.b16 %v154
    %v721 = vunpack.c.h.b16 %v154
    %v722 = vunpack.c.l.b16 %v155
    %v723 = vunpack.c.h.b16 %v155
    %v724 = vunpack.c.l.b16 %v156
    %v725 = vunpack.c.h.b16 %v156
    %v726 = vunpack.c.l.b16 %v157
    %v727 = vunpack.c.h.b16 %v157
    %v728 = vunpack.c.l.b16 %v158
    %v729 = vunpack.c.h.b16 %v158
    %v730 = vunpack.c.l.b16 %v159
    %v731 = vunpack.c.h.b16 %v159
    %v732 = vunpack.c.l.b16 %v160
    %v733 = vunpack.c.h.b16 %v160
    %v734 = vunpack.c.l.b16 %v161
    %v735 = vunpack.c.h.b16 %v161
    %v736 = vunpack.c.l.b16 %v162
    %v737 = vunpack.c.h.b16 %v162
    %v738 = vunpack.c.l.b16 %v163
    %v739 = vunpack.c.h.b16 %v163
    %v740 = vunpack.c.l.b16 %v164
    %v741 = vunpack.c.h.b16 %v164
    %v742 = vunpack.c.l.b16 %v165
    %v743 = vunpack.c.h.b16 %v165
    %v744 = vunpack.c.l.b16 %v166
    %v745 = vunpack.c.h.b16 %v166
    %v746 = vunpack.c.l.b16 %v167
    %v747 = vunpack.c.h.b16 %v167
    %v748 = vunpack.c.l.b16 %v168
    %v749 = vunpack.c.h.b16 %v168
    %v750 = vunpack.c.l.b16 %v169
    %v751 = vunpack.c.h.b16 %v169
    %v752 = vunpack.c.l.b16 %v170
    %v753 = vunpack.c.h.b16 %v170
    %v754 = vunpack.c.l.b16 %v171
    %v755 = vunpack.c.h.b16 %v171
    %v756 = vunpack.c.l.b16 %v172
    %v757 = vunpack.c.h.b16 %v172
    %v758 = vunpack.c.l.b16 %v173
    %v759 = vunpack.c.h.b16 %v173
    %v760 = vunpack.c.l.b16 %v174
    %v761 = vunpack.c.h.b16 %v174
    %v762 = vunpack.c.l.b16 %v175
    %v763 = vunpack.c.h.b16 %v175
    %v764 = vunpack.c.l.b16 %v176
    %v765 = vunpack.c.h.b16 %v176
    %v766 = vunpack.c.l.b16 %v177
    %v767 = vunpack.c.h.b16 %v177
    %v768 = vunpack.c.l.b16 %v178
    %v769 = vunpack.c.h.b16 %v178
    %v770 = vunpack.c.l.b16 %v179
    %v771 = vunpack.c.h.b16 %v179
    %v772 = vunpack.c.l.b16 %v180
    %v773 = vunpack.c.h.b16 %v180
    %v774 = vunpack.c.l.b16 %v181
    %v775 = vunpack.c.h.b16 %v181
    %v776 = vunpack.c.l.b16 %v182
    %v777 = vunpack.c.h.b16 %v182
    %v778 = vunpack.c.l.b16 %v183
    %v779 = vunpack.c.h.b16 %v183
    %v780 = vunpack.c.l.b16 %v184
    %v781 = vunpack.c.h.b16 %v184
    %v782 = vunpack.c.l.b16 %v185
    %v783 = vunpack.c.h.b16 %v185
    %v784 = vunpack.c.l.b16 %v186
    %v785 = vunpack.c.h.b16 %v186
    %v786 = vunpack.c.l.b16 %v187
    %v787 = vunpack.c.h.b16 %v187
    %v788 = vunpack.c.l.b16 %v188
    %v789 = vunpack.c.h.b16 %v188
    %v790 = vunpack.c.l.b16 %v189
    %v791 = vunpack.c.h.b16 %v189
    %v792 = vunpack.c.l.b16 %v190
    %v793 = vunpack.c.h.b16 %v190
    %v794 = vunpack.c.l.b16 %v191
    %v795 = vunpack.c.h.b16 %v191
    %v796 = vunpack.c.l.b16 %v192
    %v797 = vunpack.c.h.b16 %v192
    %v798 = vunpack.c.l.b16 %v193
    %v799 = vunpack.c.h.b16 %v193
    %v800 = vunpack.c.l.b16 %v194
    %v801 = vunpack.c.h.b16 %v194
    %v802 = vunpack.c.l.b16 %v195
    %v803 = vunpack.c.h.b16 %v195
    %v804 = vunpack.c.l.b16 %v196
    %v805 = vunpack.c.h.b16 %v196
    %v806 = vunpack.c.l.b16 %v197
    %v807 = vunpack.c.h.b16 %v197
    %v808 = vunpack.c.l.b16 %v198
    %v809 = vunpack.c.h.b16 %v198
    %v810 = vunpack.c.l.b16 %v199
    %v811 = vunpack.c.h.b16 %v199
    %v812 = vunpack.c.l.b16 %v200
    %v813 = vunpack.c.h.b16 %v200
    %v814 = vunpack.c.l.b16 %v201
    %v815 = vunpack.c.h.b16 %v201
    %v816 = vunpack.c.l.b16 %v202
    %v817 = vunpack.c.h.b16 %v202
    %v818 = vunpack.c.l.b16 %v203
    %v819 = vunpack.c.h.b16 %v203
    %v820 = vunpack.c.l.b16 %v204
    %v821 = vunpack.c.h.b16 %v204
    %v822 = vunpack.c.l.b16 %v205
    %v823 = vunpack.c.h.b16 %v205
    %v824 = vunpack.c.l.b16 %v206
    %v825 = vunpack.c.h.b16 %v206
    %v826 = vunpack.c.l.b16 %v207
    %v827 = vunpack.c.h.b16 %v207
    %v828 = vunpack.c.l.b16 %v208
    %v829 = vunpack.c.h.b16 %v208
    %v830 = vunpack.c.l.b16 %v209
    %v831 = vunpack.c.h.b16 %v209
    %v832 = vunpack.c.l.b16 %v210
    %v833 = vunpack.c.h.b16 %v210
    %v834 = vunpack.c.l.b16 %v211
    %v835 = vunpack.c.h.b16 %v211
    %v836 = vunpack.c.l.b16 %v212
    %v837 = vunpack.c.h.b16 %v212
    %v838 = vunpack.c.l.b16 %v213
    %v839 = vunpack.c.h.b16 %v213
    %v840 = vunpack.c.l.b16 %v214
    %v841 = vunpack.c.h.b16 %v214
    %v842 = vunpack.c.l.b16 %v215
    %v843 = vunpack.c.h.b16 %v215
    %v844 = vunpack.c.l.b16 %v216
    %v845 = vunpack.c.h.b16 %v216
    %v846 = vunpack.c.l.b16 %v217
    %v847 = vunpack.c.h.b16 %v217
    %v848 = vunpack.c.l.b16 %v218
    %v849 = vunpack.c.h.b16 %v218
    %v850 = vunpack.c.l.b16 %v219
    %v851 = vunpack.c.h.b16 %v219
    %v852 = vunpack.c.l.b16 %v220
    %v853 = vunpack.c.h.b16 %v220
    %v854 = vunpack.c.l.b16 %v221
    %v855 = vunpack.c.h.b16 %v221
    %v856 = vunpack.c.l.b16 %v222
    %v857 = vunpack.c.h.b16 %v222
    %v858 = vunpack.c.l.b16 %v223
    %v859 = vunpack.c.h.b16 %v223
    %v860 = vunpack.c.l.b16 %v224
    %v861 = vunpack.c.h.b16 %v224
    %v862 = vunpack.c.l.b16 %v225
    %v863 = vunpack.c.h.b16 %v225
    %v864 = vunpack.c.l.b16 %v226
    %v865 = vunpack.c.h.b16 %v226
    %v866 = vunpack.c.l.b16 %v227
    %v867 = vunpack.c.h.b16 %v227
    %v868 = vunpack.c.l.b16 %v228
    %v869 = vunpack.c.h.b16 %v228
    %v870 = vunpack.c.l.b16 %v229
    %v871 = vunpack.c.h.b16 %v229
    %v872 = vunpack.c.l.b16 %v230
    %v873 = vunpack.c.h.b16 %v230
    %v874 = vunpack.c.l.b16 %v231
    %v875 = vunpack.c.h.b16 %v231
    %v876 = vunpack.c.l.b16 %v232
    %v877 = vunpack.c.h.b16 %v232
    %v878 = vunpack.c.l.b16 %v233
    %v879 = vunpack.c.h.b16 %v233
    %v880 = vunpack.c.l.b16 %v234
    %v881 = vunpack.c.h.b16 %v234
    %v882 = vunpack.c.l.b16 %v235
    %v883 = vunpack.c.h.b16 %v235
    %v884 = vunpack.c.l.b16 %v236
    %v885 = vunpack.c.h.b16 %v236
    %v886 = vunpack.c.l.b16 %v237
    %v887 = vunpack.c.h.b16 %v237
    %v888 = vunpack.c.l.b16 %v238
    %v889 = vunpack.c.h.b16 %v238
    %v890 = vunpack.c.l.b16 %v239
    %v891 = vunpack.c.h.b16 %v239
    %v892 = vunpack.c.l.b16 %v240
    %v893 = vunpack.c.h.b16 %v240
    %v894 = vunpack.c.l.b16 %v241
    %v895 = vunpack.c.h.b16 %v241
    %v896 = vunpack.c.l.b16 %v242
    %v897 = vunpack.c.h.b16 %v242
    %v898 = vunpack.c.l.b16 %v243
    %v899 = vunpack.c.h.b16 %v243
    %v900 = vunpack.c.l.b16 %v244
    %v901 = vunpack.c.h.b16 %v244
    %v902 = vunpack.c.l.b16 %v245
    %v903 = vunpack.c.h.b16 %v245
    %v904 = vunpack.c.l.b16 %v246
    %v905 = vunpack.c.h.b16 %v246
    %v906 = vunpack.c.l.b16 %v247
    %v907 = vunpack.c.h.b16 %v247
    %v908 = vunpack.c.l.b16 %v248
    %v909 = vunpack.c.h.b16 %v248
    %v910 = vunpack.c.l.b16 %v249
    %v911 = vunpack.c.h.b16 %v249
    %v912 = vunpack.c.l.b16 %v250
    %v913 = vunpack.c.h.b16 %v250
    %v914 = vunpack.c.l.b16 %v251
    %v915 = vunpack.c.h.b16 %v251
    %v916 = vunpack.c.l.b16 %v252
    %v917 = vunpack.c.h.b16 %v252
    %v918 = vunpack.c.l.b16 %v253
    %v919 = vunpack.c.h.b16 %v253
    %v920 = vunpack.c.l.b16 %v254
    %v921 = vunpack.c.h.b16 %v254
    %v922 = vunpack.c.l.b16 %v255
    %v923 = vunpack.c.h.b16 %v255
    %v924 = vunpack.c.l.b16 %v256
    %v925 = vunpack.c.h.b16 %v256
    %v926 = vunpack.c.l.b16 %v257
    %v927 = vunpack.c.h.b16 %v257
    %v928 = vunpack.c.l.b16 %v258
    %v929 = vunpack.c.h.b16 %v258
    %v930 = vunpack.c.l.b16 %v259
    %v931 = vunpack.c.h.b16 %v259
    %v932 = vunpack.c.l.b16 %v260
    %v933 = vunpack.c.h.b16 %v260
    %v934 = vunpack.c.l.b16 %v261
    %v935 = vunpack.c.h.b16 %v261
    %v936 = vunpack.c.l.b16 %v262
    %v937 = vunpack.c.h.b16 %v262
    %v938 = vunpack.c.l.b16 %v263
    %v939 = vunpack.c.h.b16 %v263
    %v940 = vunpack.c.l.b16 %v264
    %v941 = vunpack.c.h.b16 %v264
    %v942 = vunpack.c.l.b16 %v265
    %v943 = vunpack.c.h.b16 %v265
    %v944 = vunpack.c.l.b16 %v266
    %v945 = vunpack.c.h.b16 %v266
    %v946 = vunpack.c.l.b16 %v267
    %v947 = vunpack.c.h.b16 %v267
    %v948 = vunpack.c.l.b16 %v268
    %v949 = vunpack.c.h.b16 %v268
    %v950 = vunpack.c.l.b16 %v269
    %v951 = vunpack.c.h.b16 %v269
    %v952 = vunpack.c.l.b16 %v270
    %v953 = vunpack.c.h.b16 %v270
    %v954 = vunpack.c.l.b16 %v271
    %v955 = vunpack.c.h.b16 %v271
    %v956 = vunpack.c.l.b16 %v272
    %v957 = vunpack.c.h.b16 %v272
    %v958 = vunpack.c.l.b16 %v273
    %v959 = vunpack.c.h.b16 %v273
    %v960 = vunpack.c.l.b16 %v274
    %v961 = vunpack.c.h.b16 %v274
    %v962 = vunpack.c.l.b16 %v275
    %v963 = vunpack.c.h.b16 %v275
    %v964 = vunpack.c.l.b16 %v276
    %v965 = vunpack.c.h.b16 %v276
    %v966 = vunpack.c.l.b16 %v277
    %v967 = vunpack.c.h.b16 %v277
    %v968 = vunpack.c.l.b16 %v278
    %v969 = vunpack.c.h.b16 %v278
    %v970 = vunpack.c.l.b16 %v279
    %v971 = vunpack.c.h.b16 %v279
    %v972 = vunpack.c.l.b16 %v280
    %v973 = vunpack.c.h.b16 %v280
    %v974 = vunpack.c.l.b16 %v281
    %v975 = vunpack.c.h.b16 %v281
    %v976 = vunpack.c.l.b16 %v282
    %v977 = vunpack.c.h.b16 %v282
    %v978 = vunpack.c.l.b16 %v283
    %v979 = vunpack.c.h.b16 %v283
    %v980 = vunpack.c.l.b16 %v284
    %v981 = vunpack.c.h.b16 %v284
    %v982 = vunpack.c.l.b16 %v285
    %v983 = vunpack.c.h.b16 %v285
    %v984 = vunpack.c.l.b16 %v286
    %v985 = vunpack.c.h.b16 %v286
    %v986 = vunpack.c.l.b16 %v287
    %v987 = vunpack.c.h.b16 %v287
    %v988 = vunpack.c.l.b16 %v288
    %v989 = vunpack.c.h.b16 %v288
    %v990 = vunpack.c.l.b16 %v289
    %v991 = vunpack.c.h.b16 %v289
    %v992 = vunpack.c.l.b16 %v290
    %v993 = vunpack.c.h.b16 %v290
    %v994 = vunpack.c.l.b16 %v291
    %v995 = vunpack.c.h.b16 %v291
    %v996 = vunpack.c.l.b16 %v292
    %v997 = vunpack.c.h.b16 %v292
    %v998 = vunpack.c.l.b16 %v293
    %v999 = vunpack.c.h.b16 %v293
    %v1000 = vunpack.c.l.b16 %v294
    %v1001 = vunpack.c.h.b16 %v294
    %v1002 = vunpack.c.l.b16 %v295
    %v1003 = vunpack.c.h.b16 %v295
    %v1004 = vunpack.c.l.b16 %v296
    %v1005 = vunpack.c.h.b16 %v296
    %v1006 = vunpack.c.l.b16 %v297
    %v1007 = vunpack.c.h.b16 %v297
    %v1008 = vunpack.c.l.b16 %v298
    %v1009 = vunpack.c.h.b16 %v298
    %v1010 = vunpack.c.l.b16 %v299
    %v1011 = vunpack.c.h.b16 %v299
    %v1012 = vunpack.c.l.b16 %v300
    %v1013 = vunpack.c.h.b16 %v300
    %v1014 = vunpack.c.l.b16 %v301
    %v1015 = vunpack.c.h.b16 %v301
    %v1016 = vunpack.c.l.b16 %v302
    %v1017 = vunpack.c.h.b16 %v302
    %v1018 = vunpack.c.l.b16 %v303
    %v1019 = vunpack.c.h.b16 %v303
    %v1020 = vunpack.c.l.b16 %v304
    %v1021 = vunpack.c.h.b16 %v304
    %v1022 = vunpack.c.l.b16 %v305
    %v1023 = vunpack.c.h.b16 %v305
    %v1024 = vunpack.c.l.b16 %v306
    %v1025 = vunpack.c.h.b16 %v306
    %v1026 = vunpack.c.l.b16 %v307
    %v1027 = vunpack.c.h.b16 %v307
    %v1028 = vunpack.c.l.b16 %v308
    %v1029 = vunpack.c.h.b16 %v308
    %v1030 = vunpack.c.l.b16 %v309
    %v1031 = vunpack.c.h.b16 %v309
    %v1032 = vunpack.c.l.b16 %v310
    %v1033 = vunpack.c.h.b16 %v310
    %v1034 = vunpack.c.l.b16 %v311
    %v1035 = vunpack.c.h.b16 %v311
    %v1036 = vunpack.c.l.b16 %v312
    %v1037 = vunpack.c.h.b16 %v312
    %v1038 = vunpack.c.l.b16 %v313
    %v1039 = vunpack.c.h.b16 %v313
    %v1040 = vunpack.c.l.b16 %v314
    %v1041 = vunpack.c.h.b16 %v314
    %v1042 = vunpack.c.l.b16 %v315
    %v1043 = vunpack.c.h.b16 %v315
    %v1044 = vunpack.c.l.b16 %v316
    %v1045 = vunpack.c.h.b16 %v316
    %v1046 = vunpack.c.l.b16 %v317
    %v1047 = vunpack.c.h.b16 %v317
    %v1048 = vunpack.c.l.b16 %v318
    %v1049 = vunpack.c.h.b16 %v318
    %v1050 = vunpack.c.l.b16 %v319
    %v1051 = vunpack.c.h.b16 %v319
    %v1052 = vunpack.c.l.b16 %v320
    %v1053 = vunpack.c.h.b16 %v320
    %v1054 = vunpack.c.l.b16 %v321
    %v1055 = vunpack.c.h.b16 %v321
    %v1056 = vunpack.c.l.b16 %v322
    %v1057 = vunpack.c.h.b16 %v322
    %v1058 = vunpack.c.l.b16 %v323
    %v1059 = vunpack.c.h.b16 %v323
    %v1060 = vunpack.c.l.b16 %v324
    %v1061 = vunpack.c.h.b16 %v324
    %v1062 = vunpack.c.l.b16 %v325
    %v1063 = vunpack.c.h.b16 %v325
    %v1064 = vunpack.c.l.b16 %v326
    %v1065 = vunpack.c.h.b16 %v326
    %v1066 = vunpack.c.l.b16 %v327
    %v1067 = vunpack.c.h.b16 %v327
    %v1068 = vunpack.c.l.b16 %v328
    %v1069 = vunpack.c.h.b16 %v328
    %v1070 = vunpack.c.l.b16 %v329
    %v1071 = vunpack.c.h.b16 %v329
    %v1072 = vunpack.c.l.b16 %v330
    %v1073 = vunpack.c.h.b16 %v330
    %v1074 = vunpack.c.l.b16 %v331
    %v1075 = vunpack.c.h.b16 %v331
    %v1076 = vunpack.c.l.b16 %v332
    %v1077 = vunpack.c.h.b16 %v332
    %v1078 = vunpack.c.l.b16 %v333
    %v1079 = vunpack.c.h.b16 %v333
    %v1080 = vunpack.c.l.b16 %v334
    %v1081 = vunpack.c.h.b16 %v334
    %v1082 = vunpack.c.l.b16 %v335
    %v1083 = vunpack.c.h.b16 %v335
    %v1084 = vunpack.c.l.b16 %v336
    %v1085 = vunpack.c.h.b16 %v336
    %v1086 = vunpack.c.l.b16 %v337
    %v1087 = vunpack.c.h.b16 %v337
    %v1088 = vunpack.c.l.b16 %v338
    %v1089 = vunpack.c.h.b16 %v338
    %v1090 = vunpack.c.l.b16 %v339
    %v1091 = vunpack.c.h.b16 %v339
    %v1092 = vunpack.c.l.b16 %v340
    %v1093 = vunpack.c.h.b16 %v340
    %v1094 = vunpack.c.l.b16 %v341
    %v1095 = vunpack.c.h.b16 %v341
    %v1096 = vunpack.c.l.b16 %v342
    %v1097 = vunpack.c.h.b16 %v342
    %v1098 = vunpack.c.l.b16 %v343
    %v1099 = vunpack.c.h.b16 %v343
    %v1100 = vunpack.c.l.b16 %v344
    %v1101 = vunpack.c.h.b16 %v344
    %v1102 = vunpack.c.l.b16 %v345
    %v1103 = vunpack.c.h.b16 %v345
    %v1104 = vunpack.c.l.b16 %v346
    %v1105 = vunpack.c.h.b16 %v346
    %v1106 = vunpack.c.l.b16 %v347
    %v1107 = vunpack.c.h.b16 %v347
    %v1108 = vunpack.c.l.b16 %v348
    %v1109 = vunpack.c.h.b16 %v348
    %v1110 = vunpack.c.l.b16 %v349
    %v1111 = vunpack.c.h.b16 %v349
    %v1112 = vunpack.c.l.b16 %v350
    %v1113 = vunpack.c.h.b16 %v350
    %v1114 = vunpack.c.l.b16 %v351
    %v1115 = vunpack.c.h.b16 %v351
    %v1116 = vunpack.c.l.b16 %v352
    %v1117 = vunpack.c.h.b16 %v352
    %v1118 = vunpack.c.l.b16 %v353
    %v1119 = vunpack.c.h.b16 %v353
    %v1120 = vunpack.c.l.b16 %v354
    %v1121 = vunpack.c.h.b16 %v354
    %v1122 = vunpack.c.l.b16 %v355
    %v1123 = vunpack.c.h.b16 %v355
    %v1124 = vunpack.c.l.b16 %v356
    %v1125 = vunpack.c.h.b16 %v356
    %v1126 = vunpack.c.l.b16 %v357
    %v1127 = vunpack.c.h.b16 %v357
    %v1128 = vunpack.c.l.b16 %v358
    %v1129 = vunpack.c.h.b16 %v358
    %v1130 = vunpack.c.l.b16 %v359
    %v1131 = vunpack.c.h.b16 %v359
    %v1132 = vunpack.c.l.b16 %v360
    %v1133 = vunpack.c.h.b16 %v360
    %v1134 = vunpack.c.l.b16 %v361
    %v1135 = vunpack.c.h.b16 %v361
    %v1136 = vunpack.c.l.b16 %v362
    %v1137 = vunpack.c.h.b16 %v362
    %v1138 = vunpack.c.l.b16 %v363
    %v1139 = vunpack.c.h.b16 %v363
    %v1140 = vunpack.c.l.b16 %v364
    %v1141 = vunpack.c.h.b16 %v364
    %v1142 = vunpack.c.l.b16 %v365
    %v1143 = vunpack.c.h.b16 %v365
    %v1144 = vunpack.c.l.b16 %v366
    %v1145 = vunpack.c.h.b16 %v366
    %v1146 = vunpack.c.l.b16 %v367
    %v1147 = vunpack.c.h.b16 %v367
    %v1148 = vunpack.c.l.b16 %v368
    %v1149 = vunpack.c.h.b16 %v368
    %v1150 = vunpack.c.l.b16 %v369
    %v1151 = vunpack.c.h.b16 %v369
    %v1152 = vunpack.c.l.b16 %v370
    %v1153 = vunpack.c.h.b16 %v370
    %v1154 = vunpack.c.l.b16 %v371
    %v1155 = vunpack.c.h.b16 %v371
    %v1156 = vunpack.c.l.b16 %v372
    %v1157 = vunpack.c.h.b16 %v372
    %v1158 = vunpack.c.l.b16 %v373
    %v1159 = vunpack.c.h.b16 %v373
    %v1160 = vunpack.c.l.b16 %v374
    %v1161 = vunpack.c.h.b16 %v374
    %v1162 = vunpack.c.l.b16 %v375
    %v1163 = vunpack.c.h.b16 %v375
    %v1164 = vunpack.c.l.b16 %v376
    %v1165 = vunpack.c.h.b16 %v376
    %v1166 = vunpack.c.l.b16 %v377
    %v1167 = vunpack.c.h.b16 %v377
    %v1168 = vunpack.c.l.b16 %v378
    %v1169 = vunpack.c.h.b16 %v378
    %v1170 = vunpack.c.l.b16 %v379
    %v1171 = vunpack.c.h.b16 %v379
    %v1172 = vunpack.c.l.b16 %v380
    %v1173 = vunpack.c.h.b16 %v380
    %v1174 = vunpack.c.l.b16 %v381
    %v1175 = vunpack.c.h.b16 %v381
    %v1176 = vunpack.c.l.b16 %v382
    %v1177 = vunpack.c.h.b16 %v382
    %v1178 = vunpack.c.l.b16 %v383
    %v1179 = vunpack.c.h.b16 %v383
    %v1180 = vunpack.c.l.b16 %v384
    %v1181 = vunpack.c.h.b16 %v384
    %v1182 = vunpack.c.l.b16 %v385
    %v1183 = vunpack.c.h.b16 %v385
    %v1184 = vunpack.c.l.b16 %v386
    %v1185 = vunpack.c.h.b16 %v386
    %v1186 = vunpack.c.l.b16 %v387
    %v1187 = vunpack.c.h.b16 %v387
    %v1188 = vunpack.c.l.b16 %v388
    %v1189 = vunpack.c.h.b16 %v388
    %v1190 = vunpack.c.l.b16 %v389
    %v1191 = vunpack.c.h.b16 %v389
    %v1192 = vunpack.c.l.b16 %v390
    %v1193 = vunpack.c.h.b16 %v390
    %v1194 = vunpack.c.l.b16 %v391
    %v1195 = vunpack.c.h.b16 %v391
    %v1196 = vunpack.c.l.b16 %v392
    %v1197 = vunpack.c.h.b16 %v392
    %v1198 = vunpack.c.l.b16 %v393
    %v1199 = vunpack.c.h.b16 %v393
    %v1200 = vunpack.c.l.b16 %v394
    %v1201 = vunpack.c.h.b16 %v394
    %v1202 = vunpack.c.l.b16 %v395
    %v1203 = vunpack.c.h.b16 %v395
    %v1204 = vunpack.c.l.b16 %v396
    %v1205 = vunpack.c.h.b16 %v396
    %v1206 = vunpack.c.l.b16 %v397
    %v1207 = vunpack.c.h.b16 %v397
    %v1208 = vunpack.c.l.b16 %v398
    %v1209 = vunpack.c.h.b16 %v398
    %v1210 = vunpack.c.l.b16 %v399
    %v1211 = vunpack.c.h.b16 %v399
    %v1212 = vunpack.c.l.b16 %v400
    %v1213 = vunpack.c.h.b16 %v400
    %v1214 = vunpack.c.l.b16 %v401
    %v1215 = vunpack.c.h.b16 %v401
    %v1216 = vunpack.c.l.b16 %v402
    %v1217 = vunpack.c.h.b16 %v402
    %v1218 = vunpack.c.l.b16 %v403
    %v1219 = vunpack.c.h.b16 %v403
    %v1220 = vunpack.c.l.b16 %v404
    %v1221 = vunpack.c.h.b16 %v404
    %v1222 = vunpack.c.l.b16 %v405
    %v1223 = vunpack.c.h.b16 %v405
    %v1224 = vpack.c.b16 %v716, %v712
    %v1225 = vpack.c.b16 %v717, %v713
    %v1226 = vpack.c.b16 %v718, %v714
    %v1227 = vpack.c.b16 %v719, %v715
    %v1228 = vpack.c.b16 %v724, %v720
    %v1229 = vpack.c.b16 %v725, %v721
    %v1230 = vpack.c.b16 %v726, %v722
    %v1231 = vpack.c.b16 %v727, %v723
    %v1232 = vpack.c.b16 %v732, %v728
    %v1233 = vpack.c.b16 %v733, %v729
    %v1234 = vpack.c.b16 %v734, %v730
    %v1235 = vpack.c.b16 %v735, %v731
    %v1236 = vpack.c.b16 %v740, %v736
    %v1237 = vpack.c.b16 %v741, %v737
    %v1238 = vpack.c.b16 %v742, %v738
    %v1239 = vpack.c.b16 %v743, %v739
    %v1240 = vpack.c.b16 %v748, %v744
    %v1241 = vpack.c.b16 %v749, %v745
    %v1242 = vpack.c.b16 %v750, %v746
    %v1243 = vpack.c.b16 %v751, %v747
    %v1244 = vpack.c.b16 %v756, %v752
    %v1245 = vpack.c.b16 %v757, %v753
    %v1246 = vpack.c.b16 %v758, %v754
    %v1247 = vpack.c.b16 %v759, %v755
    %v1248 = vpack.c.b16 %v764, %v760
    %v1249 = vpack.c.b16 %v765, %v761
    %v1250 = vpack.c.b16 %v766, %v762
    %v1251 = vpack.c.b16 %v767, %v763
    %v1252 = vpack.c.b16 %v772, %v768
    %v1253 = vpack.c.b16 %v773, %v769
    %v1254 = vpack.c.b16 %v774, %v770
    %v1255 = vpack.c.b16 %v775, %v771
    %v1256 = vpack.c.b16 %v780, %v776
    %v1257 = vpack.c.b16 %v781, %v777
    %v1258 = vpack.c.b16 %v782, %v778
    %v1259 = vpack.c.b16 %v783, %v779
    %v1260 = vpack.c.b16 %v788, %v784
    %v1261 = vpack.c.b16 %v789, %v785
    %v1262 = vpack.c.b16 %v790, %v786
    %v1263 = vpack.c.b16 %v791, %v787
    %v1264 = vpack.c.b16 %v796, %v792
    %v1265 = vpack.c.b16 %v797, %v793
    %v1266 = vpack.c.b16 %v798, %v794
    %v1267 = vpack.c.b16 %v799, %v795
    %v1268 = vpack.c.b16 %v804, %v800
    %v1269 = vpack.c.b16 %v805, %v801
    %v1270 = vpack.c.b16 %v806, %v802
    %v1271 = vpack.c.b16 %v807, %v803
    %v1272 = vpack.c.b16 %v812, %v808
    %v1273 = vpack.c.b16 %v813, %v809
    %v1274 = vpack.c.b16 %v814, %v810
    %v1275 = vpack.c.b16 %v815, %v811
    %v1276 = vpack.c.b16 %v820, %v816
    %v1277 = vpack.c.b16 %v821, %v817
    %v1278 = vpack.c.b16 %v822, %v818
    %v1279 = vpack.c.b16 %v823, %v819
    %v1280 = vpack.c.b16 %v828, %v824
    %v1281 = vpack.c.b16 %v829, %v825
    %v1282 = vpack.c.b16 %v830, %v826
    %v1283 = vpack.c.b16 %v831, %v827
    %v1284 = vpack.c.b16 %v836, %v832
    %v1285 = vpack.c.b16 %v837, %v833
    %v1286 = vpack.c.b16 %v838, %v834
    %v1287 = vpack.c.b16 %v839, %v835
    %v1288 = vpack.c.b16 %v844, %v840
    %v1289 = vpack.c.b16 %v845, %v841
    %v1290 = vpack.c.b16 %v846, %v842
    %v1291 = vpack.c.b16 %v847, %v843
    %v1292 = vpack.c.b16 %v852, %v848
    %v1293 = vpack.c.b16 %v853, %v849
    %v1294 = vpack.c.b16 %v854, %v850
    %v1295 = vpack.c.b16 %v855, %v851
    %v1296 = vpack.c.b16 %v860, %v856
    %v1297 = vpack.c.b16 %v861, %v857
    %v1298 = vpack.c.b16 %v862, %v858
    %v1299 = vpack.c.b16 %v863, %v859
    %v1300 = vpack.c.b16 %v868, %v864
    %v1301 = vpack.c.b16 %v869, %v865
    %v1302 = vpack.c.b16 %v870, %v866
    %v1303 = vpack.c.b16 %v871, %v867
    %v1304 = vpack.c.b16 %v876, %v872
    %v1305 = vpack.c.b16 %v877, %v873
    %v1306 = vpack.c.b16 %v878, %v874
    %v1307 = vpack.c.b16 %v879, %v875
    %v1308 = vpack.c.b16 %v884, %v880
    %v1309 = vpack.c.b16 %v885, %v881
    %v1310 = vpack.c.b16 %v886, %v882
    %v1311 = vpack.c.b16 %v887, %v883
    %v1312 = vpack.c.b16 %v892, %v888
    %v1313 = vpack.c.b16 %v893, %v889
    %v1314 = vpack.c.b16 %v894, %v890
    %v1315 = vpack.c.b16 %v895, %v891
    %v1316 = vpack.c.b16 %v900, %v896
    %v1317 = vpack.c.b16 %v901, %v897
    %v1318 = vpack.c.b16 %v902, %v898
    %v1319 = vpack.c.b16 %v903, %v899
    %v1320 = vpack.c.b16 %v908, %v904
    %v1321 = vpack.c.b16 %v909, %v905
    %v1322 = vpack.c.b16 %v910, %v906
    %v1323 = vpack.c.b16 %v911, %v907
    %v1324 = vpack.c.b16 %v916, %v912
    %v1325 = vpack.c.b16 %v917, %v913
    %v1326 = vpack.c.b16 %v918, %v914
    %v1327 = vpack.c.b16 %v919, %v915
    %v1328 = vpack.c.b16 %v924, %v920
    %v1329 = vpack.c.b16 %v925, %v921
    %v1330 = vpack.c.b16 %v926, %v922
    %v1331 = vpack.c.b16 %v927, %v923
    %v1332 = vpack.c.b16 %v932, %v928
    %v1333 = vpack.c.b16 %v933, %v929
    %v1334 = vpack.c.b16 %v934, %v930
    %v1335 = vpack.c.b16 %v935, %v931
    %v1336 = vpack.c.b16 %v940, %v936
    %v1337 = vpack.c.b16 %v941, %v937
    %v1338 = vpack.c.b16 %v942, %v938
    %v1339 = vpack.c.b16 %v943, %v939
    %v1340 = vpack.c.b16 %v948, %v944
    %v1341 = vpack.c.b16 %v949, %v945
    %v1342 = vpack.c.b16 %v950, %v946
    %v1343 = vpack.c.b16 %v951, %v947
    %v1344 = vpack.c.b16 %v956, %v952
    %v1345 = vpack.c.b16 %v957, %v953
    %v1346 = vpack.c.b16 %v958, %v954
    %v1347 = vpack.c.b16 %v959, %v955
    %v1348 = vpack.c.b16 %v964, %v960
    %v1349 = vpack.c.b16 %v965, %v961
    %v1350 = vpack.c.b16 %v966, %v962
    %v1351 = vpack.c.b16 %v967, %v963
    %v1352 = vpack.c.b16 %v972, %v968
    %v1353 = vpack.c.b16 %v973, %v969
    %v1354 = vpack.c.b16 %v974, %v970
    %v1355 = vpack.c.b16 %v975, %v971
    %v1356 = vpack.c.b16 %v980, %v976
    %v1357 = vpack.c.b16 %v981, %v977
    %v1358 = vpack.c.b16 %v982, %v978
    %v1359 = vpack.c.b16 %v983, %v979
    %v1360 = vpack.c.b16 %v988, %v984
    %v1361 = vpack.c.b16 %v989, %v985
    %v1362 = vpack.c.b16 %v990, %v986
    %v1363 = vpack.c.b16 %v991, %v987
    %v1364 = vpack.c.b16 %v996, %v992
    %v1365 = vpack.c.b16 %v997, %v993
    %v1366 = vpack.c.b16 %v998, %v994
    %v1367 = vpack.c.b16 %v999, %v995
    %v1368 = vpack.c.b16 %v1004, %v1000
    %v1369 = vpack.c.b16 %v1005, %v1001
    %v1370 = vpack.c.b16 %v1006, %v1002
    %v1371 = vpack.c.b16 %v1007, %v1003
    %v1372 = vpack.c.b16 %v1012, %v1008
    %v1373 = vpack.c.b16 %v1013, %v1009
    %v1374 = vpack.c.b16 %v1014, %v1010
    %v1375 = vpack.c.b16 %v1015, %v1011
    %v1376 = vpack.c.b16 %v1020, %v1016
    %v1377 = vpack.c.b16 %v1021, %v1017
    %v1378 = vpack.c.b16 %v1022, %v1018
    %v1379 = vpack.c.b16 %v1023, %v1019
    %v1380 = vpack.c.b16 %v1028, %v1024
    %v1381 = vpack.c.b16 %v1029, %v1025
    %v1382 = vpack.c.b16 %v1030, %v1026
    %v1383 = vpack.c.b16 %v1031, %v1027
    %v1384 = vpack.c.b16 %v1036, %v1032
    %v1385 = vpack.c.b16 %v1037, %v1033
    %v1386 = vpack.c.b16 %v1038, %v1034
    %v1387 = vpack.c.b16 %v1039, %v1035
    %v1388 = vpack.c.b16 %v1044, %v1040
    %v1389 = vpack.c.b16 %v1045, %v1041
    %v1390 = vpack.c.b16 %v1046, %v1042
    %v1391 = vpack.c.b16 %v1047, %v1043
    %v1392 = vpack.c.b16 %v1052, %v1048
    %v1393 = vpack.c.b16 %v1053, %v1049
    %v1394 = vpack.c.b16 %v1054, %v1050
    %v1395 = vpack.c.b16 %v1055, %v1051
    %v1396 = vpack.c.b16 %v1060, %v1056
    %v1397 = vpack.c.b16 %v1061, %v1057
    %v1398 = vpack.c.b16 %v1062, %v1058
    %v1399 = vpack.c.b16 %v1063, %v1059
    %v1400 = vpack.c.b16 %v1068, %v1064
    %v1401 = vpack.c.b16 %v1069, %v1065
    %v1402 = vpack.c.b16 %v1070, %v1066
    %v1403 = vpack.c.b16 %v1071, %v1067
    %v1404 = vpack.c.b16 %v1076, %v1072
    %v1405 = vpack.c.b16 %v1077, %v1073
    %v1406 = vpack.c.b16 %v1078, %v1074
    %v1407 = vpack.c.b16 %v1079, %v1075
    %v1408 = vpack.c.b16 %v1084, %v1080
    %v1409 = vpack.c.b16 %v1085, %v1081
    %v1410 = vpack.c.b16 %v1086, %v1082
    %v1411 = vpack.c.b16 %v1087, %v1083
    %v1412 = vpack.c.b16 %v1092, %v1088
    %v1413 = vpack.c.b16 %v1093, %v1089
    %v1414 = vpack.c.b16 %v1094, %v1090
    %v1415 = vpack.c.b16 %v1095, %v1091
    %v1416 = vpack.c.b16 %v1100, %v1096
    %v1417 = vpack.c.b16 %v1101, %v1097
    %v1418 = vpack.c.b16 %v1102, %v1098
    %v1419 = vpack.c.b16 %v1103, %v1099
    %v1420 = vpack.c.b16 %v1108, %v1104
    %v1421 = vpack.c.b16 %v1109, %v1105
    %v1422 = vpack.c.b16 %v1110, %v1106
    %v1423 = vpack.c.b16 %v1111, %v1107
    %v1424 = vpack.c.b16 %v1116, %v1112
    %v1425 = vpack.c.b16 %v1117, %v1113
    %v1426 = vpack.c.b16 %v1118, %v1114
    %v1427 = vpack.c.b16 %v1119, %v1115
    %v1428 = vpack.c.b16 %v1124, %v1120
    %v1429 = vpack.c.b16 %v1125, %v1121
    %v1430 = vpack.c.b16 %v1126, %v1122
    %v1431 = vpack.c.b16 %v1127, %v1123
    %v1432 = vpack.c.b16 %v1132, %v1128
    %v1433 = vpack.c.b16 %v1133, %v1129
    %v1434 = vpack.c.b16 %v1134, %v1130
    %v1435 = vpack.c.b16 %v1135, %v1131
    %v1436 = vpack.c.b16 %v1140, %v1136
    %v1437 = vpack.c.b16 %v1141, %v1137
    %v1438 = vpack.c.b16 %v1142, %v1138
    %v1439 = vpack.c.b16 %v1143, %v1139
    %v1440 = vpack.c.b16 %v1148, %v1144
    %v1441 = vpack.c.b16 %v1149, %v1145
    %v1442 = vpack.c.b16 %v1150, %v1146
    %v1443 = vpack.c.b16 %v1151, %v1147
    %v1444 = vpack.c.b16 %v1156, %v1152
    %v1445 = vpack.c.b16 %v1157, %v1153
    %v1446 = vpack.c.b16 %v1158, %v1154
    %v1447 = vpack.c.b16 %v1159, %v1155
    %v1448 = vpack.c.b16 %v1164, %v1160
    %v1449 = vpack.c.b16 %v1165, %v1161
    %v1450 = vpack.c.b16 %v1166, %v1162
    %v1451 = vpack.c.b16 %v1167, %v1163
    %v1452 = vpack.c.b16 %v1172, %v1168
    %v1453 = vpack.c.b16 %v1173, %v1169
    %v1454 = vpack.c.b16 %v1174, %v1170
    %v1455 = vpack.c.b16 %v1175, %v1171
    %v1456 = vpack.c.b16 %v1180, %v1176
    %v1457 = vpack.c.b16 %v1181, %v1177
    %v1458 = vpack.c.b16 %v1182, %v1178
    %v1459 = vpack.c.b16 %v1183, %v1179
    %v1460 = vpack.c.b16 %v1188, %v1184
    %v1461 = vpack.c.b16 %v1189, %v1185
    %v1462 = vpack.c.b16 %v1190, %v1186
    %v1463 = vpack.c.b16 %v1191, %v1187
    %v1464 = vpack.c.b16 %v1196, %v1192
    %v1465 = vpack.c.b16 %v1197, %v1193
    %v1466 = vpack.c.b16 %v1198, %v1194
    %v1467 = vpack.c.b16 %v1199, %v1195
    %v1468 = vpack.c.b16 %v1204, %v1200
    %v1469 = vpack.c.b16 %v1205, %v1201
    %v1470 = vpack.c.b16 %v1206, %v1202
    %v1471 = vpack.c.b16 %v1207, %v1203
    %v1472 = vpack.c.b16 %v1212, %v1208
    %v1473 = vpack.c.b16 %v1213, %v1209
    %v1474 = vpack.c.b16 %v1214, %v1210
    %v1475 = vpack.c.b16 %v1215, %v1211
    %v1476 = vpack.c.b16 %v1220, %v1216
    %v1477 = vpack.c.b16 %v1221, %v1217
    %v1478 = vpack.c.b16 %v1222, %v1218
    %v1479 = vpack.c.b16 %v1223, %v1219
    %1736 = vmatprep.subr.bf16.mxu0 %v1225
    %1737 = vmatpush1.bf16.msra.mxu0 %v1224
    %1738 = vmatprep.subr.bf16.mxu0 %v1229
    %1739 = vmatpush1.bf16.msra.mxu0 %v1228
    %1740 = vmatprep.subr.bf16.mxu0 %v1233
    %1741 = vmatpush1.bf16.msra.mxu0 %v1232
    %1742 = vmatprep.subr.bf16.mxu0 %v1237
    %1743 = vmatpush1.bf16.msra.mxu0 %v1236
    %1744 = vmatprep.subr.bf16.mxu0 %v1241
    %1745 = vmatpush1.bf16.msra.mxu0 %v1240
    %1746 = vmatprep.subr.bf16.mxu0 %v1245
    %1747 = vmatpush1.bf16.msra.mxu0 %v1244
    %1748 = vmatprep.subr.bf16.mxu0 %v1249
    %1749 = vmatpush1.bf16.msra.mxu0 %v1248
    %1750 = vmatprep.subr.bf16.mxu0 %v1253
    %1751 = vmatpush1.bf16.msra.mxu0 %v1252
    %1752 = vmatprep.subr.bf16.mxu0 %v1257
    %1753 = vmatpush1.bf16.msra.mxu0 %v1256
    %1754 = vmatprep.subr.bf16.mxu0 %v1261
    %1755 = vmatpush1.bf16.msra.mxu0 %v1260
    %1756 = vmatprep.subr.bf16.mxu0 %v1265
    %1757 = vmatpush1.bf16.msra.mxu0 %v1264
    %1758 = vmatprep.subr.bf16.mxu0 %v1269
    %1759 = vmatpush1.bf16.msra.mxu0 %v1268
    %1760 = vmatprep.subr.bf16.mxu0 %v1273
    %1761 = vmatpush1.bf16.msra.mxu0 %v1272
    %1762 = vmatprep.subr.bf16.mxu0 %v1277
    %1763 = vmatpush1.bf16.msra.mxu0 %v1276
    %1764 = vmatprep.subr.bf16.mxu0 %v1281
    %1765 = vmatpush1.bf16.msra.mxu0 %v1280
    %1766 = vmatprep.subr.bf16.mxu0 %v1285
    %1767 = vmatpush1.bf16.msra.mxu0 %v1284
    %1768 = vmatprep.mubr.bf16.mxu0 %v441
    %1769 = vmatmul.mubr.bf16.gmra.mrb[0].mxu0 %v440
    %v1770 = vpop.f32.mrb[0].mxu0
    %v1771 = vadd.f32 %v411, %v1770
    %v1772 = vpop.f32.mrb[0].mxu0
    %v1773 = vadd.f32 %v415, %v1772
    %v1774 = vpop.f32.mrb[0].mxu0
    %v1775 = vpop.f32.mrb[0].mxu0
    %1776 = vdwg.mxu0
    %1777 = vmatprep.subr.bf16.mxu0 %v1289
    %1778 = vmatpush1.bf16.msra.mxu0 %v1288
    %1779 = vmatprep.subr.bf16.mxu0 %v1293
    %1780 = vmatpush1.bf16.msra.mxu0 %v1292
    %1781 = vmatprep.subr.bf16.mxu0 %v1297
    %1782 = vmatpush1.bf16.msra.mxu0 %v1296
    %1783 = vmatprep.subr.bf16.mxu0 %v1301
    %1784 = vmatpush1.bf16.msra.mxu0 %v1300
    %1785 = vmatprep.subr.bf16.mxu0 %v1305
    %1786 = vmatpush1.bf16.msra.mxu0 %v1304
    %1787 = vmatprep.subr.bf16.mxu0 %v1309
    %1788 = vmatpush1.bf16.msra.mxu0 %v1308
    %1789 = vmatprep.subr.bf16.mxu0 %v1313
    %1790 = vmatpush1.bf16.msra.mxu0 %v1312
    %1791 = vmatprep.subr.bf16.mxu0 %v1317
    %1792 = vmatpush1.bf16.msra.mxu0 %v1316
    %1793 = vmatprep.subr.bf16.mxu0 %v1321
    %1794 = vmatpush1.bf16.msra.mxu0 %v1320
    %1795 = vmatprep.subr.bf16.mxu0 %v1325
    %1796 = vmatpush1.bf16.msra.mxu0 %v1324
    %1797 = vmatprep.subr.bf16.mxu0 %v1329
    %1798 = vmatpush1.bf16.msra.mxu0 %v1328
    %1799 = vmatprep.subr.bf16.mxu0 %v1333
    %1800 = vmatpush1.bf16.msra.mxu0 %v1332
    %1801 = vmatprep.subr.bf16.mxu0 %v1337
    %1802 = vmatpush1.bf16.msra.mxu0 %v1336
    %1803 = vmatprep.subr.bf16.mxu0 %v1341
    %1804 = vmatpush1.bf16.msra.mxu0 %v1340
    %1805 = vmatprep.subr.bf16.mxu0 %v1345
    %1806 = vmatpush1.bf16.msra.mxu0 %v1344
    %1807 = vmatprep.subr.bf16.mxu0 %v1349
    %1808 = vmatpush1.bf16.msra.mxu0 %v1348
    %1809 = vmatprep.mubr.bf16.mxu0 %v443
    %1810 = vmatmul.mubr.bf16.gmra.mrb[0].mxu0 %v442
    %v1811 = vpop.f32.mrb[0].mxu0
    %v1812 = vadd.f32 %v1771, %v1811
    %v1813 = vpop.f32.mrb[0].mxu0
    %v1814 = vadd.f32 %v1773, %v1813
    %v1815 = vpop.f32.mrb[0].mxu0
    %v1816 = vpop.f32.mrb[0].mxu0
    %1817 = vdwg.mxu0
    %1818 = vmatprep.subr.bf16.mxu0 %v1353
    %1819 = vmatpush1.bf16.msra.mxu0 %v1352
    %1820 = vmatprep.subr.bf16.mxu0 %v1357
    %1821 = vmatpush1.bf16.msra.mxu0 %v1356
    %1822 = vmatprep.subr.bf16.mxu0 %v1361
    %1823 = vmatpush1.bf16.msra.mxu0 %v1360
    %1824 = vmatprep.subr.bf16.mxu0 %v1365
    %1825 = vmatpush1.bf16.msra.mxu0 %v1364
    %1826 = vmatprep.subr.bf16.mxu0 %v1369
    %1827 = vmatpush1.bf16.msra.mxu0 %v1368
    %1828 = vmatprep.subr.bf16.mxu0 %v1373
    %1829 = vmatpush1.bf16.msra.mxu0 %v1372
    %1830 = vmatprep.subr.bf16.mxu0 %v1377
    %1831 = vmatpush1.bf16.msra.mxu0 %v1376
    %1832 = vmatprep.subr.bf16.mxu0 %v1381
    %1833 = vmatpush1.bf16.msra.mxu0 %v1380
    %1834 = vmatprep.subr.bf16.mxu0 %v1385
    %1835 = vmatpush1.bf16.msra.mxu0 %v1384
    %1836 = vmatprep.subr.bf16.mxu0 %v1389
    %1837 = vmatpush1.bf16.msra.mxu0 %v1388
    %1838 = vmatprep.subr.bf16.mxu0 %v1393
    %1839 = vmatpush1.bf16.msra.mxu0 %v1392
    %1840 = vmatprep.subr.bf16.mxu0 %v1397
    %1841 = vmatpush1.bf16.msra.mxu0 %v1396
    %1842 = vmatprep.subr.bf16.mxu0 %v1401
    %1843 = vmatpush1.bf16.msra.mxu0 %v1400
    %1844 = vmatprep.subr.bf16.mxu0 %v1405
    %1845 = vmatpush1.bf16.msra.mxu0 %v1404
    %1846 = vmatprep.subr.bf16.mxu0 %v1409
    %1847 = vmatpush1.bf16.msra.mxu0 %v1408
    %1848 = vmatprep.subr.bf16.mxu0 %v1413
    %1849 = vmatpush1.bf16.msra.mxu0 %v1412
    %1850 = vmatprep.mubr.bf16.mxu0 %v445
    %1851 = vmatmul.mubr.bf16.gmra.mrb[0].mxu0 %v444
    %v1852 = vpop.f32.mrb[0].mxu0
    %v1853 = vadd.f32 %v1812, %v1852
    %v1854 = vpop.f32.mrb[0].mxu0
    %v1855 = vadd.f32 %v1814, %v1854
    %v1856 = vpop.f32.mrb[0].mxu0
    %v1857 = vpop.f32.mrb[0].mxu0
    %1858 = vdwg.mxu0
    %1859 = vmatprep.subr.bf16.mxu0 %v1417
    %1860 = vmatpush1.bf16.msra.mxu0 %v1416
    %1861 = vmatprep.subr.bf16.mxu0 %v1421
    %1862 = vmatpush1.bf16.msra.mxu0 %v1420
    %1863 = vmatprep.subr.bf16.mxu0 %v1425
    %1864 = vmatpush1.bf16.msra.mxu0 %v1424
    %1865 = vmatprep.subr.bf16.mxu0 %v1429
    %1866 = vmatpush1.bf16.msra.mxu0 %v1428
    %1867 = vmatprep.subr.bf16.mxu0 %v1433
    %1868 = vmatpush1.bf16.msra.mxu0 %v1432
    %1869 = vmatprep.subr.bf16.mxu0 %v1437
    %1870 = vmatpush1.bf16.msra.mxu0 %v1436
    %1871 = vmatprep.subr.bf16.mxu0 %v1441
    %1872 = vmatpush1.bf16.msra.mxu0 %v1440
    %1873 = vmatprep.subr.bf16.mxu0 %v1445
    %1874 = vmatpush1.bf16.msra.mxu0 %v1444
    %1875 = vmatprep.subr.bf16.mxu0 %v1449
    %1876 = vmatpush1.bf16.msra.mxu0 %v1448
    %1877 = vmatprep.subr.bf16.mxu0 %v1453
    %1878 = vmatpush1.bf16.msra.mxu0 %v1452
    %1879 = vmatprep.subr.bf16.mxu0 %v1457
    %1880 = vmatpush1.bf16.msra.mxu0 %v1456
    %1881 = vmatprep.subr.bf16.mxu0 %v1461
    %1882 = vmatpush1.bf16.msra.mxu0 %v1460
    %1883 = vmatprep.subr.bf16.mxu0 %v1465
    %1884 = vmatpush1.bf16.msra.mxu0 %v1464
    %1885 = vmatprep.subr.bf16.mxu0 %v1469
    %1886 = vmatpush1.bf16.msra.mxu0 %v1468
    %1887 = vmatprep.subr.bf16.mxu0 %v1473
    %1888 = vmatpush1.bf16.msra.mxu0 %v1472
    %1889 = vmatprep.subr.bf16.mxu0 %v1477
    %1890 = vmatpush1.bf16.msra.mxu0 %v1476
    %1891 = vmatprep.mubr.bf16.mxu0 %v447
    %1892 = vmatmul.mubr.bf16.gmra.mrb[0].mxu0 %v446
    %v1893 = vpop.f32.mrb[0].mxu0
    %v1894 = vadd.f32 %v1853, %v1893
    %v1895 = vpop.f32.mrb[0].mxu0
    %v1896 = vadd.f32 %v1855, %v1895
    %v1897 = vpop.f32.mrb[0].mxu0
    %v1898 = vpop.f32.mrb[0].mxu0
    %1899 = vdwg.mxu0
    %1900 = vmatprep.subr.bf16.mxu0 %v1227
    %1901 = vmatpush1.bf16.msra.mxu0 %v1226
    %1902 = vmatprep.subr.bf16.mxu0 %v1231
    %1903 = vmatpush1.bf16.msra.mxu0 %v1230
    %1904 = vmatprep.subr.bf16.mxu0 %v1235
    %1905 = vmatpush1.bf16.msra.mxu0 %v1234
    %1906 = vmatprep.subr.bf16.mxu0 %v1239
    %1907 = vmatpush1.bf16.msra.mxu0 %v1238
    %1908 = vmatprep.subr.bf16.mxu0 %v1243
    %1909 = vmatpush1.bf16.msra.mxu0 %v1242
    %1910 = vmatprep.subr.bf16.mxu0 %v1247
    %1911 = vmatpush1.bf16.msra.mxu0 %v1246
    %1912 = vmatprep.subr.bf16.mxu0 %v1251
    %1913 = vmatpush1.bf16.msra.mxu0 %v1250
    %1914 = vmatprep.subr.bf16.mxu0 %v1255
    %1915 = vmatpush1.bf16.msra.mxu0 %v1254
    %1916 = vmatprep.subr.bf16.mxu0 %v1259
    %1917 = vmatpush1.bf16.msra.mxu0 %v1258
    %1918 = vmatprep.subr.bf16.mxu0 %v1263
    %1919 = vmatpush1.bf16.msra.mxu0 %v1262
    %1920 = vmatprep.subr.bf16.mxu0 %v1267
    %1921 = vmatpush1.bf16.msra.mxu0 %v1266
    %1922 = vmatprep.subr.bf16.mxu0 %v1271
    %1923 = vmatpush1.bf16.msra.mxu0 %v1270
    %1924 = vmatprep.subr.bf16.mxu0 %v1275
    %1925 = vmatpush1.bf16.msra.mxu0 %v1274
    %1926 = vmatprep.subr.bf16.mxu0 %v1279
    %1927 = vmatpush1.bf16.msra.mxu0 %v1278
    %1928 = vmatprep.subr.bf16.mxu0 %v1283
    %1929 = vmatpush1.bf16.msra.mxu0 %v1282
    %1930 = vmatprep.subr.bf16.mxu0 %v1287
    %1931 = vmatpush1.bf16.msra.mxu0 %v1286
    %1932 = vmatprep.mubr.bf16.mxu0 %v441
    %1933 = vmatmul.mubr.bf16.gmra.mrb[0].mxu0 %v440
    %v1934 = vpop.f32.mrb[0].mxu0
    %v1935 = vadd.f32 %v419, %v1934
    %v1936 = vpop.f32.mrb[0].mxu0
    %v1937 = vadd.f32 %v423, %v1936
    %v1938 = vpop.f32.mrb[0].mxu0
    %v1939 = vpop.f32.mrb[0].mxu0
    %1940 = vdwg.mxu0
    %1941 = vmatprep.subr.bf16.mxu0 %v1291
    %1942 = vmatpush1.bf16.msra.mxu0 %v1290
    %1943 = vmatprep.subr.bf16.mxu0 %v1295
    %1944 = vmatpush1.bf16.msra.mxu0 %v1294
    %1945 = vmatprep.subr.bf16.mxu0 %v1299
    %1946 = vmatpush1.bf16.msra.mxu0 %v1298
    %1947 = vmatprep.subr.bf16.mxu0 %v1303
    %1948 = vmatpush1.bf16.msra.mxu0 %v1302
    %1949 = vmatprep.subr.bf16.mxu0 %v1307
    %1950 = vmatpush1.bf16.msra.mxu0 %v1306
    %1951 = vmatprep.subr.bf16.mxu0 %v1311
    %1952 = vmatpush1.bf16.msra.mxu0 %v1310
    %1953 = vmatprep.subr.bf16.mxu0 %v1315
    %1954 = vmatpush1.bf16.msra.mxu0 %v1314
    %1955 = vmatprep.subr.bf16.mxu0 %v1319
    %1956 = vmatpush1.bf16.msra.mxu0 %v1318
    %1957 = vmatprep.subr.bf16.mxu0 %v1323
    %1958 = vmatpush1.bf16.msra.mxu0 %v1322
    %1959 = vmatprep.subr.bf16.mxu0 %v1327
    %1960 = vmatpush1.bf16.msra.mxu0 %v1326
    %1961 = vmatprep.subr.bf16.mxu0 %v1331
    %1962 = vmatpush1.bf16.msra.mxu0 %v1330
    %1963 = vmatprep.subr.bf16.mxu0 %v1335
    %1964 = vmatpush1.bf16.msra.mxu0 %v1334
    %1965 = vmatprep.subr.bf16.mxu0 %v1339
    %1966 = vmatpush1.bf16.msra.mxu0 %v1338
    %1967 = vmatprep.subr.bf16.mxu0 %v1343
    %1968 = vmatpush1.bf16.msra.mxu0 %v1342
    %1969 = vmatprep.subr.bf16.mxu0 %v1347
    %1970 = vmatpush1.bf16.msra.mxu0 %v1346
    %1971 = vmatprep.subr.bf16.mxu0 %v1351
    %1972 = vmatpush1.bf16.msra.mxu0 %v1350
    %1973 = vmatprep.mubr.bf16.mxu0 %v443
    %1974 = vmatmul.mubr.bf16.gmra.mrb[0].mxu0 %v442
    %v1975 = vpop.f32.mrb[0].mxu0
    %v1976 = vadd.f32 %v1935, %v1975
    %v1977 = vpop.f32.mrb[0].mxu0
    %v1978 = vadd.f32 %v1937, %v1977
    %v1979 = vpop.f32.mrb[0].mxu0
    %v1980 = vpop.f32.mrb[0].mxu0
    %1981 = vdwg.mxu0
    %1982 = vmatprep.subr.bf16.mxu0 %v1355
    %1983 = vmatpush1.bf16.msra.mxu0 %v1354
    %1984 = vmatprep.subr.bf16.mxu0 %v1359
    %1985 = vmatpush1.bf16.msra.mxu0 %v1358
    %1986 = vmatprep.subr.bf16.mxu0 %v1363
    %1987 = vmatpush1.bf16.msra.mxu0 %v1362
    %1988 = vmatprep.subr.bf16.mxu0 %v1367
    %1989 = vmatpush1.bf16.msra.mxu0 %v1366
    %1990 = vmatprep.subr.bf16.mxu0 %v1371
    %1991 = vmatpush1.bf16.msra.mxu0 %v1370
    %1992 = vmatprep.subr.bf16.mxu0 %v1375
    %1993 = vmatpush1.bf16.msra.mxu0 %v1374
    %1994 = vmatprep.subr.bf16.mxu0 %v1379
    %1995 = vmatpush1.bf16.msra.mxu0 %v1378
    %1996 = vmatprep.subr.bf16.mxu0 %v1383
    %1997 = vmatpush1.bf16.msra.mxu0 %v1382
    %1998 = vmatprep.subr.bf16.mxu0 %v1387
    %1999 = vmatpush1.bf16.msra.mxu0 %v1386
    %2000 = vmatprep.subr.bf16.mxu0 %v1391
    %2001 = vmatpush1.bf16.msra.mxu0 %v1390
    %2002 = vmatprep.subr.bf16.mxu0 %v1395
    %2003 = vmatpush1.bf16.msra.mxu0 %v1394
    %2004 = vmatprep.subr.bf16.mxu0 %v1399
    %2005 = vmatpush1.bf16.msra.mxu0 %v1398
    %2006 = vmatprep.subr.bf16.mxu0 %v1403
    %2007 = vmatpush1.bf16.msra.mxu0 %v1402
    %2008 = vmatprep.subr.bf16.mxu0 %v1407
    %2009 = vmatpush1.bf16.msra.mxu0 %v1406
    %2010 = vmatprep.subr.bf16.mxu0 %v1411
    %2011 = vmatpush1.bf16.msra.mxu0 %v1410
    %2012 = vmatprep.subr.bf16.mxu0 %v1415
    %2013 = vmatpush1.bf16.msra.mxu0 %v1414
    %2014 = vmatprep.mubr.bf16.mxu0 %v445
    %2015 = vmatmul.mubr.bf16.gmra.mrb[0].mxu0 %v444
    %v2016 = vpop.f32.mrb[0].mxu0
    %v2017 = vadd.f32 %v1976, %v2016
    %v2018 = vpop.f32.mrb[0].mxu0
    %v2019 = vadd.f32 %v1978, %v2018
    %v2020 = vpop.f32.mrb[0].mxu0
    %v2021 = vpop.f32.mrb[0].mxu0
    %2022 = vdwg.mxu0
    %2023 = vmatprep.subr.bf16.mxu0 %v1419
    %2024 = vmatpush1.bf16.msra.mxu0 %v1418
    %2025 = vmatprep.subr.bf16.mxu0 %v1423
    %2026 = vmatpush1.bf16.msra.mxu0 %v1422
    %2027 = vmatprep.subr.bf16.mxu0 %v1427
    %2028 = vmatpush1.bf16.msra.mxu0 %v1426
    %2029 = vmatprep.subr.bf16.mxu0 %v1431
    %2030 = vmatpush1.bf16.msra.mxu0 %v1430
    %2031 = vmatprep.subr.bf16.mxu0 %v1435
    %2032 = vmatpush1.bf16.msra.mxu0 %v1434
    %2033 = vmatprep.subr.bf16.mxu0 %v1439
    %2034 = vmatpush1.bf16.msra.mxu0 %v1438
    %2035 = vmatprep.subr.bf16.mxu0 %v1443
    %2036 = vmatpush1.bf16.msra.mxu0 %v1442
    %2037 = vmatprep.subr.bf16.mxu0 %v1447
    %2038 = vmatpush1.bf16.msra.mxu0 %v1446
    %2039 = vmatprep.subr.bf16.mxu0 %v1451
    %2040 = vmatpush1.bf16.msra.mxu0 %v1450
    %2041 = vmatprep.subr.bf16.mxu0 %v1455
    %2042 = vmatpush1.bf16.msra.mxu0 %v1454
    %2043 = vmatprep.subr.bf16.mxu0 %v1459
    %2044 = vmatpush1.bf16.msra.mxu0 %v1458
    %2045 = vmatprep.subr.bf16.mxu0 %v1463
    %2046 = vmatpush1.bf16.msra.mxu0 %v1462
    %2047 = vmatprep.subr.bf16.mxu0 %v1467
    %2048 = vmatpush1.bf16.msra.mxu0 %v1466
    %2049 = vmatprep.subr.bf16.mxu0 %v1471
    %2050 = vmatpush1.bf16.msra.mxu0 %v1470
    %2051 = vmatprep.subr.bf16.mxu0 %v1475
    %2052 = vmatpush1.bf16.msra.mxu0 %v1474
    %2053 = vmatprep.subr.bf16.mxu0 %v1479
    %2054 = vmatpush1.bf16.msra.mxu0 %v1478
    %2055 = vmatprep.mubr.bf16.mxu0 %v447
    %2056 = vmatmul.mubr.bf16.gmra.mrb[0].mxu0 %v446
    %v2057 = vpop.f32.mrb[0].mxu0
    %v2058 = vadd.f32 %v2017, %v2057
    %v2059 = vpop.f32.mrb[0].mxu0
    %v2060 = vadd.f32 %v2019, %v2059
    %v2061 = vpop.f32.mrb[0].mxu0
    %v2062 = vpop.f32.mrb[0].mxu0
    %2063 = vdwg.mxu0
    %v2064 = vmax.f32 %v1894, 0.0
    %v2065 = vmax.f32 %v1896, 0.0
    %v2066 = vmax.f32 %v2058, 0.0
    %v2067 = vmax.f32 %v2060, 0.0
    %v2068 = vpack.c.bf16 %v2064, %v2064
    %v2069 = vpack.c.bf16 %v2065, %v2065
    %v2070 = vpack.c.bf16 %v2066, %v2066
    %v2071 = vpack.c.bf16 %v2067, %v2067
    %v2072 = vld [vmem:[#allocation8] sm:$0xff]
    %v2073 = vld [vmem:[#allocation8 + $0x8] sm:$0xff]
    %v2074 = vld [vmem:[#allocation8 + $0x10] sm:$0xff]
    %v2075 = vld [vmem:[#allocation8 + $0x18] sm:$0xff]
    %v2076 = vld [vmem:[#allocation8 + $0x20] sm:$0xff]
    %v2077 = vld [vmem:[#allocation8 + $0x28] sm:$0xff]
    %v2078 = vld [vmem:[#allocation8 + $0x30] sm:$0xff]
    %v2079 = vld [vmem:[#allocation8 + $0x38] sm:$0xff]
    %v2080 = vld [vmem:[#allocation8 + $0x40] sm:$0xff]
    %v2081 = vld [vmem:[#allocation8 + $0x48] sm:$0xff]
    %v2082 = vld [vmem:[#allocation8 + $0x50] sm:$0xff]
    %v2083 = vld [vmem:[#allocation8 + $0x58] sm:$0xff]
    %v2084 = vld [vmem:[#allocation8 + $0x60] sm:$0xff]
    %v2085 = vld [vmem:[#allocation8 + $0x68] sm:$0xff]
    %v2086 = vld [vmem:[#allocation8 + $0x70] sm:$0xff]
    %v2087 = vld [vmem:[#allocation8 + $0x78] sm:$0xff]
    %v2088 = vld [vmem:[#allocation8 + $0x80] sm:$0xff]
    %v2089 = vld [vmem:[#allocation8 + $0x88] sm:$0xff]
    %v2090 = vld [vmem:[#allocation8 + $0x90] sm:$0xff]
    %v2091 = vld [vmem:[#allocation8 + $0x98] sm:$0xff]
    %v2092 = vld [vmem:[#allocation8 + $0xa0] sm:$0xff]
    %v2093 = vld [vmem:[#allocation8 + $0xa8] sm:$0xff]
    %v2094 = vld [vmem:[#allocation8 + $0xb0] sm:$0xff]
    %v2095 = vld [vmem:[#allocation8 + $0xb8] sm:$0xff]
    %v2096 = vld [vmem:[#allocation8 + $0xc0] sm:$0xff]
    %v2097 = vld [vmem:[#allocation8 + $0xc8] sm:$0xff]
    %v2098 = vld [vmem:[#allocation8 + $0xd0] sm:$0xff]
    %v2099 = vld [vmem:[#allocation8 + $0xd8] sm:$0xff]
    %v2100 = vld [vmem:[#allocation8 + $0xe0] sm:$0xff]
    %v2101 = vld [vmem:[#allocation8 + $0xe8] sm:$0xff]
    %v2102 = vld [vmem:[#allocation8 + $0xf0] sm:$0xff]
    %v2103 = vld [vmem:[#allocation8 + $0xf8] sm:$0xff]
    %v2104 = vld [vmem:[#allocation8 + $0x100] sm:$0xff]
    %v2105 = vld [vmem:[#allocation8 + $0x108] sm:$0xff]
    %v2106 = vld [vmem:[#allocation8 + $0x110] sm:$0xff]
    %v2107 = vld [vmem:[#allocation8 + $0x118] sm:$0xff]
    %v2108 = vld [vmem:[#allocation8 + $0x120] sm:$0xff]
    %v2109 = vld [vmem:[#allocation8 + $0x128] sm:$0xff]
    %v2110 = vld [vmem:[#allocation8 + $0x130] sm:$0xff]
    %v2111 = vld [vmem:[#allocation8 + $0x138] sm:$0xff]
    %v2112 = vld [vmem:[#allocation8 + $0x140] sm:$0xff]
    %v2113 = vld [vmem:[#allocation8 + $0x148] sm:$0xff]
    %v2114 = vld [vmem:[#allocation8 + $0x150] sm:$0xff]
    %v2115 = vld [vmem:[#allocation8 + $0x158] sm:$0xff]
    %v2116 = vld [vmem:[#allocation8 + $0x160] sm:$0xff]
    %v2117 = vld [vmem:[#allocation8 + $0x168] sm:$0xff]
    %v2118 = vld [vmem:[#allocation8 + $0x170] sm:$0xff]
    %v2119 = vld [vmem:[#allocation8 + $0x178] sm:$0xff]
    %v2120 = vld [vmem:[#allocation8 + $0x180] sm:$0xff]
    %v2121 = vld [vmem:[#allocation8 + $0x188] sm:$0xff]
    %v2122 = vld [vmem:[#allocation8 + $0x190] sm:$0xff]
    %v2123 = vld [vmem:[#allocation8 + $0x198] sm:$0xff]
    %v2124 = vld [vmem:[#allocation8 + $0x1a0] sm:$0xff]
    %v2125 = vld [vmem:[#allocation8 + $0x1a8] sm:$0xff]
    %v2126 = vld [vmem:[#allocation8 + $0x1b0] sm:$0xff]
    %v2127 = vld [vmem:[#allocation8 + $0x1b8] sm:$0xff]
    %v2128 = vld [vmem:[#allocation8 + $0x1c0] sm:$0xff]
    %v2129 = vld [vmem:[#allocation8 + $0x1c8] sm:$0xff]
    %v2130 = vld [vmem:[#allocation8 + $0x1d0] sm:$0xff]
    %v2131 = vld [vmem:[#allocation8 + $0x1d8] sm:$0xff]
    %v2132 = vld [vmem:[#allocation8 + $0x1e0] sm:$0xff]
    %v2133 = vld [vmem:[#allocation8 + $0x1e8] sm:$0xff]
    %v2134 = vld [vmem:[#allocation8 + $0x1f0] sm:$0xff]
    %v2135 = vld [vmem:[#allocation8 + $0x1f8] sm:$0xff]
    %v2136 = vld [vmem:[#allocation10] sm:$0x3]
    %v2138 = vlaneseq
    %v2139 = vshrl.u32 %v2138, 7
    %v2140 = vsub.s32 0, %v2139
    %v2141 = vrot.slane %v2136, %v2140
    %v2142 = vlaneseq
    %v2143 = vshrl.u32 %v2142, 7
    %v2144 = vsub.s32 1, %v2143
    %v2145 = vrot.slane %v2136, %v2144
    %v2212 = vunpack.c.l.b16 %v2072
    %v2213 = vunpack.c.h.b16 %v2072
    %v2214 = vunpack.c.l.b16 %v2073
    %v2215 = vunpack.c.h.b16 %v2073
    %v2216 = vunpack.c.l.b16 %v2074
    %v2217 = vunpack.c.h.b16 %v2074
    %v2218 = vunpack.c.l.b16 %v2075
    %v2219 = vunpack.c.h.b16 %v2075
    %v2220 = vunpack.c.l.b16 %v2076
    %v2221 = vunpack.c.h.b16 %v2076
    %v2222 = vunpack.c.l.b16 %v2077
    %v2223 = vunpack.c.h.b16 %v2077
    %v2224 = vunpack.c.l.b16 %v2078
    %v2225 = vunpack.c.h.b16 %v2078
    %v2226 = vunpack.c.l.b16 %v2079
    %v2227 = vunpack.c.h.b16 %v2079
    %v2228 = vunpack.c.l.b16 %v2080
    %v2229 = vunpack.c.h.b16 %v2080
    %v2230 = vunpack.c.l.b16 %v2081
    %v2231 = vunpack.c.h.b16 %v2081
    %v2232 = vunpack.c.l.b16 %v2082
    %v2233 = vunpack.c.h.b16 %v2082
    %v2234 = vunpack.c.l.b16 %v2083
    %v2235 = vunpack.c.h.b16 %v2083
    %v2236 = vunpack.c.l.b16 %v2084
    %v2237 = vunpack.c.h.b16 %v2084
    %v2238 = vunpack.c.l.b16 %v2085
    %v2239 = vunpack.c.h.b16 %v2085
    %v2240 = vunpack.c.l.b16 %v2086
    %v2241 = vunpack.c.h.b16 %v2086
    %v2242 = vunpack.c.l.b16 %v2087
    %v2243 = vunpack.c.h.b16 %v2087
    %v2244 = vunpack.c.l.b16 %v2088
    %v2245 = vunpack.c.h.b16 %v2088
    %v2246 = vunpack.c.l.b16 %v2089
    %v2247 = vunpack.c.h.b16 %v2089
    %v2248 = vunpack.c.l.b16 %v2090
    %v2249 = vunpack.c.h.b16 %v2090
    %v2250 = vunpack.c.l.b16 %v2091
    %v2251 = vunpack.c.h.b16 %v2091
    %v2252 = vunpack.c.l.b16 %v2092
    %v2253 = vunpack.c.h.b16 %v2092
    %v2254 = vunpack.c.l.b16 %v2093
    %v2255 = vunpack.c.h.b16 %v2093
    %v2256 = vunpack.c.l.b16 %v2094
    %v2257 = vunpack.c.h.b16 %v2094
    %v2258 = vunpack.c.l.b16 %v2095
    %v2259 = vunpack.c.h.b16 %v2095
    %v2260 = vunpack.c.l.b16 %v2096
    %v2261 = vunpack.c.h.b16 %v2096
    %v2262 = vunpack.c.l.b16 %v2097
    %v2263 = vunpack.c.h.b16 %v2097
    %v2264 = vunpack.c.l.b16 %v2098
    %v2265 = vunpack.c.h.b16 %v2098
    %v2266 = vunpack.c.l.b16 %v2099
    %v2267 = vunpack.c.h.b16 %v2099
    %v2268 = vunpack.c.l.b16 %v2100
    %v2269 = vunpack.c.h.b16 %v2100
    %v2270 = vunpack.c.l.b16 %v2101
    %v2271 = vunpack.c.h.b16 %v2101
    %v2272 = vunpack.c.l.b16 %v2102
    %v2273 = vunpack.c.h.b16 %v2102
    %v2274 = vunpack.c.l.b16 %v2103
    %v2275 = vunpack.c.h.b16 %v2103
    %v2276 = vunpack.c.l.b16 %v2104
    %v2277 = vunpack.c.h.b16 %v2104
    %v2278 = vunpack.c.l.b16 %v2105
    %v2279 = vunpack.c.h.b16 %v2105
    %v2280 = vunpack.c.l.b16 %v2106
    %v2281 = vunpack.c.h.b16 %v2106
    %v2282 = vunpack.c.l.b16 %v2107
    %v2283 = vunpack.c.h.b16 %v2107
    %v2284 = vunpack.c.l.b16 %v2108
    %v2285 = vunpack.c.h.b16 %v2108
    %v2286 = vunpack.c.l.b16 %v2109
    %v2287 = vunpack.c.h.b16 %v2109
    %v2288 = vunpack.c.l.b16 %v2110
    %v2289 = vunpack.c.h.b16 %v2110
    %v2290 = vunpack.c.l.b16 %v2111
    %v2291 = vunpack.c.h.b16 %v2111
    %v2292 = vunpack.c.l.b16 %v2112
    %v2293 = vunpack.c.h.b16 %v2112
    %v2294 = vunpack.c.l.b16 %v2113
    %v2295 = vunpack.c.h.b16 %v2113
    %v2296 = vunpack.c.l.b16 %v2114
    %v2297 = vunpack.c.h.b16 %v2114
    %v2298 = vunpack.c.l.b16 %v2115
    %v2299 = vunpack.c.h.b16 %v2115
    %v2300 = vunpack.c.l.b16 %v2116
    %v2301 = vunpack.c.h.b16 %v2116
    %v2302 = vunpack.c.l.b16 %v2117
    %v2303 = vunpack.c.h.b16 %v2117
    %v2304 = vunpack.c.l.b16 %v2118
    %v2305 = vunpack.c.h.b16 %v2118
    %v2306 = vunpack.c.l.b16 %v2119
    %v2307 = vunpack.c.h.b16 %v2119
    %v2308 = vunpack.c.l.b16 %v2120
    %v2309 = vunpack.c.h.b16 %v2120
    %v2310 = vunpack.c.l.b16 %v2121
    %v2311 = vunpack.c.h.b16 %v2121
    %v2312 = vunpack.c.l.b16 %v2122
    %v2313 = vunpack.c.h.b16 %v2122
    %v2314 = vunpack.c.l.b16 %v2123
    %v2315 = vunpack.c.h.b16 %v2123
    %v2316 = vunpack.c.l.b16 %v2124
    %v2317 = vunpack.c.h.b16 %v2124
    %v2318 = vunpack.c.l.b16 %v2125
    %v2319 = vunpack.c.h.b16 %v2125
    %v2320 = vunpack.c.l.b16 %v2126
    %v2321 = vunpack.c.h.b16 %v2126
    %v2322 = vunpack.c.l.b16 %v2127
    %v2323 = vunpack.c.h.b16 %v2127
    %v2324 = vunpack.c.l.b16 %v2128
    %v2325 = vunpack.c.h.b16 %v2128
    %v2326 = vunpack.c.l.b16 %v2129
    %v2327 = vunpack.c.h.b16 %v2129
    %v2328 = vunpack.c.l.b16 %v2130
    %v2329 = vunpack.c.h.b16 %v2130
    %v2330 = vunpack.c.l.b16 %v2131
    %v2331 = vunpack.c.h.b16 %v2131
    %v2332 = vunpack.c.l.b16 %v2132
    %v2333 = vunpack.c.h.b16 %v2132
    %v2334 = vunpack.c.l.b16 %v2133
    %v2335 = vunpack.c.h.b16 %v2133
    %v2336 = vunpack.c.l.b16 %v2134
    %v2337 = vunpack.c.h.b16 %v2134
    %v2338 = vunpack.c.l.b16 %v2135
    %v2339 = vunpack.c.h.b16 %v2135
    %v2340 = vpack.c.b16 %v2214, %v2212
    %v2341 = vpack.c.b16 %v2215, %v2213
    %v2342 = vpack.c.b16 %v2218, %v2216
    %v2343 = vpack.c.b16 %v2219, %v2217
    %v2344 = vpack.c.b16 %v2222, %v2220
    %v2345 = vpack.c.b16 %v2223, %v2221
    %v2346 = vpack.c.b16 %v2226, %v2224
    %v2347 = vpack.c.b16 %v2227, %v2225
    %v2348 = vpack.c.b16 %v2230, %v2228
    %v2349 = vpack.c.b16 %v2231, %v2229
    %v2350 = vpack.c.b16 %v2234, %v2232
    %v2351 = vpack.c.b16 %v2235, %v2233
    %v2352 = vpack.c.b16 %v2238, %v2236
    %v2353 = vpack.c.b16 %v2239, %v2237
    %v2354 = vpack.c.b16 %v2242, %v2240
    %v2355 = vpack.c.b16 %v2243, %v2241
    %v2356 = vpack.c.b16 %v2246, %v2244
    %v2357 = vpack.c.b16 %v2247, %v2245
    %v2358 = vpack.c.b16 %v2250, %v2248
    %v2359 = vpack.c.b16 %v2251, %v2249
    %v2360 = vpack.c.b16 %v2254, %v2252
    %v2361 = vpack.c.b16 %v2255, %v2253
    %v2362 = vpack.c.b16 %v2258, %v2256
    %v2363 = vpack.c.b16 %v2259, %v2257
    %v2364 = vpack.c.b16 %v2262, %v2260
    %v2365 = vpack.c.b16 %v2263, %v2261
    %v2366 = vpack.c.b16 %v2266, %v2264
    %v2367 = vpack.c.b16 %v2267, %v2265
    %v2368 = vpack.c.b16 %v2270, %v2268
    %v2369 = vpack.c.b16 %v2271, %v2269
    %v2370 = vpack.c.b16 %v2274, %v2272
    %v2371 = vpack.c.b16 %v2275, %v2273
    %v2372 = vpack.c.b16 %v2278, %v2276
    %v2373 = vpack.c.b16 %v2279, %v2277
    %v2374 = vpack.c.b16 %v2282, %v2280
    %v2375 = vpack.c.b16 %v2283, %v2281
    %v2376 = vpack.c.b16 %v2286, %v2284
    %v2377 = vpack.c.b16 %v2287, %v2285
    %v2378 = vpack.c.b16 %v2290, %v2288
    %v2379 = vpack.c.b16 %v2291, %v2289
    %v2380 = vpack.c.b16 %v2294, %v2292
    %v2381 = vpack.c.b16 %v2295, %v2293
    %v2382 = vpack.c.b16 %v2298, %v2296
    %v2383 = vpack.c.b16 %v2299, %v2297
    %v2384 = vpack.c.b16 %v2302, %v2300
    %v2385 = vpack.c.b16 %v2303, %v2301
    %v2386 = vpack.c.b16 %v2306, %v2304
    %v2387 = vpack.c.b16 %v2307, %v2305
    %v2388 = vpack.c.b16 %v2310, %v2308
    %v2389 = vpack.c.b16 %v2311, %v2309
    %v2390 = vpack.c.b16 %v2314, %v2312
    %v2391 = vpack.c.b16 %v2315, %v2313
    %v2392 = vpack.c.b16 %v2318, %v2316
    %v2393 = vpack.c.b16 %v2319, %v2317
    %v2394 = vpack.c.b16 %v2322, %v2320
    %v2395 = vpack.c.b16 %v2323, %v2321
    %v2396 = vpack.c.b16 %v2326, %v2324
    %v2397 = vpack.c.b16 %v2327, %v2325
    %v2398 = vpack.c.b16 %v2330, %v2328
    %v2399 = vpack.c.b16 %v2331, %v2329
    %v2400 = vpack.c.b16 %v2334, %v2332
    %v2401 = vpack.c.b16 %v2335, %v2333
    %v2402 = vpack.c.b16 %v2338, %v2336
    %v2403 = vpack.c.b16 %v2339, %v2337
    %2468 = vmatprep.subr.bf16.mxu0 %v2341
    %2469 = vmatpush1.bf16.msra.mxu0 %v2340
    %2470 = vmatprep.subr.bf16.mxu0 %v2343
    %2471 = vmatpush1.bf16.msra.mxu0 %v2342
    %2472 = vmatprep.subr.bf16.mxu0 %v2345
    %2473 = vmatpush1.bf16.msra.mxu0 %v2344
    %2474 = vmatprep.subr.bf16.mxu0 %v2347
    %2475 = vmatpush1.bf16.msra.mxu0 %v2346
    %2476 = vmatprep.subr.bf16.mxu0 %v2349
    %2477 = vmatpush1.bf16.msra.mxu0 %v2348
    %2478 = vmatprep.subr.bf16.mxu0 %v2351
    %2479 = vmatpush1.bf16.msra.mxu0 %v2350
    %2480 = vmatprep.subr.bf16.mxu0 %v2353
    %2481 = vmatpush1.bf16.msra.mxu0 %v2352
    %2482 = vmatprep.subr.bf16.mxu0 %v2355
    %2483 = vmatpush1.bf16.msra.mxu0 %v2354
    %2484 = vmatprep.subr.bf16.mxu0 %v2357
    %2485 = vmatpush1.bf16.msra.mxu0 %v2356
    %2486 = vmatprep.subr.bf16.mxu0 %v2359
    %2487 = vmatpush1.bf16.msra.mxu0 %v2358
    %2488 = vmatprep.subr.bf16.mxu0 %v2361
    %2489 = vmatpush1.bf16.msra.mxu0 %v2360
    %2490 = vmatprep.subr.bf16.mxu0 %v2363
    %2491 = vmatpush1.bf16.msra.mxu0 %v2362
    %2492 = vmatprep.subr.bf16.mxu0 %v2365
    %2493 = vmatpush1.bf16.msra.mxu0 %v2364
    %2494 = vmatprep.subr.bf16.mxu0 %v2367
    %2495 = vmatpush1.bf16.msra.mxu0 %v2366
    %2496 = vmatprep.subr.bf16.mxu0 %v2369
    %2497 = vmatpush1.bf16.msra.mxu0 %v2368
    %2498 = vmatprep.subr.bf16.mxu0 %v2371
    %2499 = vmatpush1.bf16.msra.mxu0 %v2370
    %2500 = vmatprep.mubr.bf16.mxu0 %v2069
    %2501 = vmatmul.mubr.bf16.gmra.mrb[0].mxu0 %v2068
    %v2502 = vpop.f32.mrb[0].mxu0
    %v2503 = vadd.f32 %v2141, %v2502
    %v2504 = vpop.f32.mrb[0].mxu0
    %v2505 = vadd.f32 %v2145, %v2504
    %v2506 = vpop.f32.mrb[0].mxu0
    %v2507 = vpop.f32.mrb[0].mxu0
    %2508 = vdwg.mxu0
    %2509 = vmatprep.subr.bf16.mxu0 %v2373
    %2510 = vmatpush1.bf16.msra.mxu0 %v2372
    %2511 = vmatprep.subr.bf16.mxu0 %v2375
    %2512 = vmatpush1.bf16.msra.mxu0 %v2374
    %2513 = vmatprep.subr.bf16.mxu0 %v2377
    %2514 = vmatpush1.bf16.msra.mxu0 %v2376
    %2515 = vmatprep.subr.bf16.mxu0 %v2379
    %2516 = vmatpush1.bf16.msra.mxu0 %v2378
    %2517 = vmatprep.subr.bf16.mxu0 %v2381
    %2518 = vmatpush1.bf16.msra.mxu0 %v2380
    %2519 = vmatprep.subr.bf16.mxu0 %v2383
    %2520 = vmatpush1.bf16.msra.mxu0 %v2382
    %2521 = vmatprep.subr.bf16.mxu0 %v2385
    %2522 = vmatpush1.bf16.msra.mxu0 %v2384
    %2523 = vmatprep.subr.bf16.mxu0 %v2387
    %2524 = vmatpush1.bf16.msra.mxu0 %v2386
    %2525 = vmatprep.subr.bf16.mxu0 %v2389
    %2526 = vmatpush1.bf16.msra.mxu0 %v2388
    %2527 = vmatprep.subr.bf16.mxu0 %v2391
    %2528 = vmatpush1.bf16.msra.mxu0 %v2390
    %2529 = vmatprep.subr.bf16.mxu0 %v2393
    %2530 = vmatpush1.bf16.msra.mxu0 %v2392
    %2531 = vmatprep.subr.bf16.mxu0 %v2395
    %2532 = vmatpush1.bf16.msra.mxu0 %v2394
    %2533 = vmatprep.subr.bf16.mxu0 %v2397
    %2534 = vmatpush1.bf16.msra.mxu0 %v2396
    %2535 = vmatprep.subr.bf16.mxu0 %v2399
    %2536 = vmatpush1.bf16.msra.mxu0 %v2398
    %2537 = vmatprep.subr.bf16.mxu0 %v2401
    %2538 = vmatpush1.bf16.msra.mxu0 %v2400
    %2539 = vmatprep.subr.bf16.mxu0 %v2403
    %2540 = vmatpush1.bf16.msra.mxu0 %v2402
    %2541 = vmatprep.mubr.bf16.mxu0 %v2071
    %2542 = vmatmul.mubr.bf16.gmra.mrb[0].mxu0 %v2070
    %v2543 = vpop.f32.mrb[0].mxu0
    %v2544 = vadd.f32 %v2503, %v2543
    %v2545 = vpop.f32.mrb[0].mxu0
    %v2546 = vadd.f32 %v2505, %v2545
    %v2547 = vpop.f32.mrb[0].mxu0
    %v2548 = vpop.f32.mrb[0].mxu0
    %2549 = vdwg.mxu0
    %v2550 = vmax.f32 %v2544, 0.0
    %v2551 = vmax.f32 %v2546, 0.0
    %v2552 = vpack.c.bf16 %v2550, %v2550
    %v2553 = vpack.c.bf16 %v2551, %v2551
    %v2554 = vld [vmem:[#allocation11] sm:$0xf]
    %v2555 = vld [vmem:[#allocation11 + $0x4] sm:$0xf]
    %v2556 = vld [vmem:[#allocation11 + $0x8] sm:$0xf]
    %v2557 = vld [vmem:[#allocation11 + $0xc] sm:$0xf]
    %v2558 = vld [vmem:[#allocation11 + $0x10] sm:$0xf]
    %v2559 = vld [vmem:[#allocation11 + $0x14] sm:$0xf]
    %v2560 = vld [vmem:[#allocation11 + $0x18] sm:$0xf]
    %v2561 = vld [vmem:[#allocation11 + $0x1c] sm:$0xf]
    %v2562 = vld [vmem:[#allocation11 + $0x20] sm:$0xf]
    %v2563 = vld [vmem:[#allocation11 + $0x24] sm:$0xf]
    %v2564 = vld [vmem:[#allocation11 + $0x28] sm:$0xf]
    %v2565 = vld [vmem:[#allocation11 + $0x2c] sm:$0xf]
    %v2566 = vld [vmem:[#allocation11 + $0x30] sm:$0xf]
    %v2567 = vld [vmem:[#allocation11 + $0x34] sm:$0xf]
    %v2568 = vld [vmem:[#allocation11 + $0x38] sm:$0xf]
    %v2569 = vld [vmem:[#allocation11 + $0x3c] sm:$0xf]
    %v2570 = vld [vmem:[#allocation11 + $0x40] sm:$0xf]
    %v2571 = vld [vmem:[#allocation11 + $0x44] sm:$0xf]
    %v2572 = vld [vmem:[#allocation11 + $0x48] sm:$0xf]
    %v2573 = vld [vmem:[#allocation11 + $0x4c] sm:$0xf]
    %v2574 = vld [vmem:[#allocation11 + $0x50] sm:$0xf]
    %v2575 = vld [vmem:[#allocation11 + $0x54] sm:$0xf]
    %v2576 = vld [vmem:[#allocation11 + $0x58] sm:$0xf]
    %v2577 = vld [vmem:[#allocation11 + $0x5c] sm:$0xf]
    %v2578 = vld [vmem:[#allocation11 + $0x60] sm:$0xf]
    %v2579 = vld [vmem:[#allocation11 + $0x64] sm:$0xf]
    %v2580 = vld [vmem:[#allocation11 + $0x68] sm:$0xf]
    %v2581 = vld [vmem:[#allocation11 + $0x6c] sm:$0xf]
    %v2582 = vld [vmem:[#allocation11 + $0x70] sm:$0xf]
    %v2583 = vld [vmem:[#allocation11 + $0x74] sm:$0xf]
    %v2584 = vld [vmem:[#allocation11 + $0x78] sm:$0xf]
    %v2585 = vld [vmem:[#allocation11 + $0x7c] sm:$0xf]
    %v2586 = vld [vmem:[#allocation13] sm:$0x1]
    %v2588 = vlaneseq
    %v2589 = vshrl.u32 %v2588, 7
    %v2590 = vsub.s32 0, %v2589
    %v2591 = vrot.slane %v2586, %v2590
    %v2625 = vunpack.c.l.b16 %v2554
    %v2626 = vunpack.c.l.b16 %v2555
    %v2627 = vunpack.c.l.b16 %v2556
    %v2628 = vunpack.c.l.b16 %v2557
    %v2629 = vunpack.c.l.b16 %v2558
    %v2630 = vunpack.c.l.b16 %v2559
    %v2631 = vunpack.c.l.b16 %v2560
    %v2632 = vunpack.c.l.b16 %v2561
    %v2633 = vunpack.c.l.b16 %v2562
    %v2634 = vunpack.c.l.b16 %v2563
    %v2635 = vunpack.c.l.b16 %v2564
    %v2636 = vunpack.c.l.b16 %v2565
    %v2637 = vunpack.c.l.b16 %v2566
    %v2638 = vunpack.c.l.b16 %v2567
    %v2639 = vunpack.c.l.b16 %v2568
    %v2640 = vunpack.c.l.b16 %v2569
    %v2641 = vunpack.c.l.b16 %v2570
    %v2642 = vunpack.c.l.b16 %v2571
    %v2643 = vunpack.c.l.b16 %v2572
    %v2644 = vunpack.c.l.b16 %v2573
    %v2645 = vunpack.c.l.b16 %v2574
    %v2646 = vunpack.c.l.b16 %v2575
    %v2647 = vunpack.c.l.b16 %v2576
    %v2648 = vunpack.c.l.b16 %v2577
    %v2649 = vunpack.c.l.b16 %v2578
    %v2650 = vunpack.c.l.b16 %v2579
    %v2651 = vunpack.c.l.b16 %v2580
    %v2652 = vunpack.c.l.b16 %v2581
    %v2653 = vunpack.c.l.b16 %v2582
    %v2654 = vunpack.c.l.b16 %v2583
    %v2655 = vunpack.c.l.b16 %v2584
    %v2656 = vunpack.c.l.b16 %v2585
    %v2657 = vpack.c.b16 %v2626, %v2625
    %v2658 = vpack.c.b16 %v2628, %v2627
    %v2659 = vpack.c.b16 %v2630, %v2629
    %v2660 = vpack.c.b16 %v2632, %v2631
    %v2661 = vpack.c.b16 %v2634, %v2633
    %v2662 = vpack.c.b16 %v2636, %v2635
    %v2663 = vpack.c.b16 %v2638, %v2637
    %v2664 = vpack.c.b16 %v2640, %v2639
    %v2665 = vpack.c.b16 %v2642, %v2641
    %v2666 = vpack.c.b16 %v2644, %v2643
    %v2667 = vpack.c.b16 %v2646, %v2645
    %v2668 = vpack.c.b16 %v2648, %v2647
    %v2669 = vpack.c.b16 %v2650, %v2649
    %v2670 = vpack.c.b16 %v2652, %v2651
    %v2671 = vpack.c.b16 %v2654, %v2653
    %v2672 = vpack.c.b16 %v2656, %v2655
    %2689 = vmatprep.subr.bf16.mxu0 0
    %2690 = vmatpush1.bf16.msra.mxu0 %v2657
    %2691 = vmatprep.subr.bf16.mxu0 0
    %2692 = vmatpush1.bf16.msra.mxu0 %v2658
    %2693 = vmatprep.subr.bf16.mxu0 0
    %2694 = vmatpush1.bf16.msra.mxu0 %v2659
    %2695 = vmatprep.subr.bf16.mxu0 0
    %2696 = vmatpush1.bf16.msra.mxu0 %v2660
    %2697 = vmatprep.subr.bf16.mxu0 0
    %2698 = vmatpush1.bf16.msra.mxu0 %v2661
    %2699 = vmatprep.subr.bf16.mxu0 0
    %2700 = vmatpush1.bf16.msra.mxu0 %v2662
    %2701 = vmatprep.subr.bf16.mxu0 0
    %2702 = vmatpush1.bf16.msra.mxu0 %v2663
    %2703 = vmatprep.subr.bf16.mxu0 0
    %2704 = vmatpush1.bf16.msra.mxu0 %v2664
    %2705 = vmatprep.subr.bf16.mxu0 0
    %2706 = vmatpush1.bf16.msra.mxu0 %v2665
    %2707 = vmatprep.subr.bf16.mxu0 0
    %2708 = vmatpush1.bf16.msra.mxu0 %v2666
    %2709 = vmatprep.subr.bf16.mxu0 0
    %2710 = vmatpush1.bf16.msra.mxu0 %v2667
    %2711 = vmatprep.subr.bf16.mxu0 0
    %2712 = vmatpush1.bf16.msra.mxu0 %v2668
    %2713 = vmatprep.subr.bf16.mxu0 0
    %2714 = vmatpush1.bf16.msra.mxu0 %v2669
    %2715 = vmatprep.subr.bf16.mxu0 0
    %2716 = vmatpush1.bf16.msra.mxu0 %v2670
    %2717 = vmatprep.subr.bf16.mxu0 0
    %2718 = vmatpush1.bf16.msra.mxu0 %v2671
    %2719 = vmatprep.subr.bf16.mxu0 0
    %2720 = vmatpush1.bf16.msra.mxu0 %v2672
    %2721 = vmatprep.mubr.bf16.mxu0 %v2553
    %2722 = vmatmul.mubr.bf16.gmra.mrb[0].mxu0 %v2552
    %v2723 = vpop.f32.mrb[0].mxu0
    %v2724 = vadd.f32 %v2591, %v2723
    %v2725 = vpop.f32.mrb[0].mxu0
    %v2726 = vpop.f32.mrb[0].mxu0
    %v2727 = vpop.f32.mrb[0].mxu0
    %2728 = vdwg.mxu0
    %v2729 = vmax.f32 %v2724, 0.0
    %v2730 = vpack.c.bf16 %v2729, %v2729
    %v2731 = vld [vmem:[#allocation14] sm:$0xf]
    %v2732 = vld [vmem:[#allocation14 + $0x4] sm:$0xf]
    %v2733 = vld [vmem:[#allocation14 + $0x8] sm:$0xf]
    %v2734 = vld [vmem:[#allocation14 + $0xc] sm:$0xf]
    %v2735 = vld [vmem:[#allocation14 + $0x10] sm:$0xf]
    %v2736 = vld [vmem:[#allocation14 + $0x14] sm:$0xf]
    %v2737 = vld [vmem:[#allocation14 + $0x18] sm:$0xf]
    %v2738 = vld [vmem:[#allocation14 + $0x1c] sm:$0xf]
    %v2739 = vld [vmem:[#allocation14 + $0x20] sm:$0xf]
    %v2740 = vld [vmem:[#allocation14 + $0x24] sm:$0xf]
    %v2741 = vld [vmem:[#allocation14 + $0x28] sm:$0xf]
    %v2742 = vld [vmem:[#allocation14 + $0x2c] sm:$0xf]
    %v2743 = vld [vmem:[#allocation14 + $0x30] sm:$0xf]
    %v2744 = vld [vmem:[#allocation14 + $0x34] sm:$0xf]
    %v2745 = vld [vmem:[#allocation14 + $0x38] sm:$0xf]
    %v2746 = vld [vmem:[#allocation14 + $0x3c] sm:$0xf]
    %v2747 = vld [vmem:[#allocation16] sm:$0x1]
    %v2749 = vlaneseq
    %v2750 = vshrl.u32 %v2749, 7
    %v2751 = vsub.s32 0, %v2750
    %v2752 = vrot.slane %v2747, %v2751
    %v2770 = vunpack.c.l.b16 %v2731
    %v2771 = vunpack.c.l.b16 %v2732
    %v2772 = vunpack.c.l.b16 %v2733
    %v2773 = vunpack.c.l.b16 %v2734
    %v2774 = vunpack.c.l.b16 %v2735
    %v2775 = vunpack.c.l.b16 %v2736
    %v2776 = vunpack.c.l.b16 %v2737
    %v2777 = vunpack.c.l.b16 %v2738
    %v2778 = vunpack.c.l.b16 %v2739
    %v2779 = vunpack.c.l.b16 %v2740
    %v2780 = vunpack.c.l.b16 %v2741
    %v2781 = vunpack.c.l.b16 %v2742
    %v2782 = vunpack.c.l.b16 %v2743
    %v2783 = vunpack.c.l.b16 %v2744
    %v2784 = vunpack.c.l.b16 %v2745
    %v2785 = vunpack.c.l.b16 %v2746
    %v2786 = vpack.c.b16 %v2771, %v2770
    %v2787 = vpack.c.b16 %v2773, %v2772
    %v2788 = vpack.c.b16 %v2775, %v2774
    %v2789 = vpack.c.b16 %v2777, %v2776
    %v2790 = vpack.c.b16 %v2779, %v2778
    %v2791 = vpack.c.b16 %v2781, %v2780
    %v2792 = vpack.c.b16 %v2783, %v2782
    %v2793 = vpack.c.b16 %v2785, %v2784
    %2802 = vmatprep.subr.bf16.mxu0 0
    %2803 = vmatpush1.bf16.msra.mxu0 %v2786
    %2804 = vmatprep.subr.bf16.mxu0 0
    %2805 = vmatpush1.bf16.msra.mxu0 %v2787
    %2806 = vmatprep.subr.bf16.mxu0 0
    %2807 = vmatpush1.bf16.msra.mxu0 %v2788
    %2808 = vmatprep.subr.bf16.mxu0 0
    %2809 = vmatpush1.bf16.msra.mxu0 %v2789
    %2810 = vmatprep.subr.bf16.mxu0 0
    %2811 = vmatpush1.bf16.msra.mxu0 %v2790
    %2812 = vmatprep.subr.bf16.mxu0 0
    %2813 = vmatpush1.bf16.msra.mxu0 %v2791
    %2814 = vmatprep.subr.bf16.mxu0 0
    %2815 = vmatpush1.bf16.msra.mxu0 %v2792
    %2816 = vmatprep.subr.bf16.mxu0 0
    %2817 = vmatpush1.bf16.msra.mxu0 %v2793
    %2818 = vmatprep.subr.bf16.mxu0 0
    %2819 = vmatpush1.bf16.msra.mxu0 0
    %2820 = vmatprep.subr.bf16.mxu0 0
    %2821 = vmatpush1.bf16.msra.mxu0 0
    %2822 = vmatprep.subr.bf16.mxu0 0
    %2823 = vmatpush1.bf16.msra.mxu0 0
    %2824 = vmatprep.subr.bf16.mxu0 0
    %2825 = vmatpush1.bf16.msra.mxu0 0
    %2826 = vmatprep.subr.bf16.mxu0 0
    %2827 = vmatpush1.bf16.msra.mxu0 0
    %2828 = vmatprep.subr.bf16.mxu0 0
    %2829 = vmatpush1.bf16.msra.mxu0 0
    %2830 = vmatprep.subr.bf16.mxu0 0
    %2831 = vmatpush1.bf16.msra.mxu0 0
    %2832 = vmatprep.subr.bf16.mxu0 0
    %2833 = vmatpush1.bf16.msra.mxu0 0
    %2834 = vmatprep.mubr.bf16.mxu0 0
    %2835 = vmatmul.mubr.bf16.gmra.mrb[0].mxu0 %v2730
    %v2836 = vpop.f32.mrb[0].mxu0
    %v2837 = vadd.f32 %v2752, %v2836
    %v2838 = vpop.f32.mrb[0].mxu0
    %v2839 = vpop.f32.mrb[0].mxu0
    %v2840 = vpop.f32.mrb[0].mxu0
    %2841 = vdwg.mxu0
    %v2842 = vsub.f32 0.0, %v2837
    %v2843 = vmul.f32 %v2842, 1.442695
    %v2844 = vpow.pop %v2843
    %v2845 = vadd.f32 %v2844, 1.0
    %v2846 = vrcp.pop %v2845
    %2847 = vst [vmem:[#allocation17] sm:$0xff] %v2846
    // Predicated region
    $region74: #{tpu_custom_call.1} parent=1 // pred_check
      _
    $region75: #{tpu_custom_call.1} parent=1 // pred_check_branch
      %2849 = sbr.rel (0) target = $region77
    $region76: #{tpu_custom_call.1} parent=1 // pred_region
      %s2851 = ssub.s32 128, 128
      %2852 = vsyncadd [#allocation4], %s2851
      %s2854 = sshll.u32 [#allocation17], 4
      %s2855 = int_to_ptr.vmem [resolvable:$true] %s2854
      %2857 = dma.vmem_to_hbm [thread:$0]  %s2855, 128, %s9, [#allocation4]
    $region77: #{tpu_custom_call.1} parent=1 // pred_fallthru
      _
    // Predicated region
    $region78: #{tpu_custom_call.1} parent=1 // pred_check
      _
    $region79: #{tpu_custom_call.1} parent=1 // pred_check_branch
      %2859 = sbr.rel (0) target = $region81
    $region80: #{tpu_custom_call.1} parent=1 // pred_region
      %2860 = dma.done [#allocation4], 128
    $region81: #{tpu_custom_call.1} parent=1 // pred_fallthru
      _
    %2861 = vsyncpa [#allocation3], 1
    %2862 = vsyncpa [#allocation6], 1
    %2863 = vsyncpa [#allocation9], 1
    %2864 = vsyncpa [#allocation12], 1
    %2865 = vsyncpa [#allocation15], 1
    %2866 = vsyncpa [#allocation4], 1

</llo_original>
